<compile_context>
chip_gen: v7x
topology: tpu7x:2x2x1
jax: 0.10.0
libtpu: 0.0.40
codegen_flags: <defaults>
</compile_context>

<pallas_src>
import math
import functools

import jax
import jax.numpy as jnp
from jax import lax
from jax.experimental import pallas as pl
from jax.experimental.pallas import tpu as pltpu


_SQRT_2_OVER_PI = math.sqrt(2.0 / math.pi)


def _gelu_new(x):
    # 0.5 * x * (1 + tanh(sqrt(2/pi) * (x + 0.044715 * x^3)))
    return 0.5 * x * (1.0 + jnp.tanh(_SQRT_2_OVER_PI * (x + 0.044715 * x * x * x)))


def decoder_block_kernel(q_ref, s_ref, mb_ref,
                         wq_ref, bq_ref, wk_ref, bk_ref, wv_ref, bv_ref,
                         wo_ref, bo_ref, w1_ref, b1_ref, w2_ref, b2_ref,
                         g_ref, beta_ref, o_ref, *, n_heads):
    _, S, D = q_ref.shape
    dh = D // n_heads
    inv_sqrt_dh = 1.0 / math.sqrt(dh)

    xq = q_ref[0]            # (S, D) query rows of this batch element
    xs = s_ref[0]            # (S, D) key/value rows of this batch element
    mbias = mb_ref[...]      # (1, 1, S) additive mask bias (0 attend / -1e30 masked)

    # --- QKV projections: one full-K MXU matmul each ---
    q = jnp.dot(xq, wq_ref[...], preferred_element_type=jnp.float32) + bq_ref[...]
    k = jnp.dot(xs, wk_ref[...], preferred_element_type=jnp.float32) + bk_ref[...]
    v = jnp.dot(xs, wv_ref[...], preferred_element_type=jnp.float32) + bv_ref[...]
    q = q * inv_sqrt_dh      # hoisted: scale once on the full (S, D)

    # --- attention: heads as a batch dim of batched dot_generals ---
    q4 = q.reshape(S, n_heads, dh)
    k4 = k.reshape(S, n_heads, dh)
    v4 = v.reshape(S, n_heads, dh)

    # scores (H, Sq, Sk); mask bias broadcasts over heads and query rows
    sc = jnp.einsum("qhd,khd->hqk", q4, k4,
                    preferred_element_type=jnp.float32) + mbias
    sc_max = jnp.max(sc, axis=-1, keepdims=True)
    e = jnp.exp(sc - sc_max)
    den = jnp.sum(e, axis=-1, keepdims=True)
    r = pl.reciprocal(den, approx=True)
    r = r * (2.0 - den * r)             # one Newton step -> ~exact reciprocal
    w = e * r

    # context per head, merged back to (S, D); single full-K output projection
    ctx = jnp.einsum("hqk,khd->qhd", w, v4, preferred_element_type=jnp.float32)
    ctx2 = ctx.reshape(S, D)
    sa = jnp.dot(ctx2, wo_ref[...], preferred_element_type=jnp.float32) + bo_ref[...]

    # --- FFN: lin1 -> gelu_new -> lin2 ---
    h1 = _gelu_new(jnp.dot(sa, w1_ref[...], preferred_element_type=jnp.float32)
                   + b1_ref[...])
    ff = jnp.dot(h1, w2_ref[...], preferred_element_type=jnp.float32) + b2_ref[...]

    # --- residual + LayerNorm(eps=1e-12) ---
    x = ff + sa
    mean = jnp.mean(x, axis=-1, keepdims=True)
    var = jnp.mean((x - mean) * (x - mean), axis=-1, keepdims=True)
    y = (x - mean) * lax.rsqrt(var + 1e-12) * g_ref[...] + beta_ref[...]

    o_ref[0] = y


def transformer_decoder_block(query, states, attn_mask, params, n_heads):
    B, S, D = query.shape
    HID = params["w1"].shape[0]   # hidden_dim (torch layout (hidden, dim))
    dh = D // n_heads

    # transpose linear weights to (in, out); biases / LN params to 2D (1, X)
    wq_t = params["wq"].T.astype(jnp.float32)
    wk_t = params["wk"].T.astype(jnp.float32)
    wv_t = params["wv"].T.astype(jnp.float32)
    wo_t = params["wo"].T.astype(jnp.float32)
    w1_t = params["w1"].T.astype(jnp.float32)
    w2_t = params["w2"].T.astype(jnp.float32)
    bq = params["bq"].reshape(1, D).astype(jnp.float32)
    bk = params["bk"].reshape(1, D).astype(jnp.float32)
    bv = params["bv"].reshape(1, D).astype(jnp.float32)
    bo = params["bo"].reshape(1, D).astype(jnp.float32)
    b1 = params["b1"].reshape(1, HID).astype(jnp.float32)
    b2 = params["b2"].reshape(1, D).astype(jnp.float32)
    g = params["ln_g"].reshape(1, D).astype(jnp.float32)
    beta = params["ln_b"].reshape(1, D).astype(jnp.float32)

    # additive mask bias computed once in the wrapper: 0 = attend, -1e30 = masked
    mbias = jnp.where(attn_mask == 0, jnp.float32(-1e30),
                      jnp.float32(0.0)).reshape(B, 1, S)

    q3 = query.astype(jnp.float32)
    s3 = states.astype(jnp.float32)

    def wspec(shape):
        # grid-invariant weight block: fetched once, stays resident across the
        # (parallel) batch axis.
        return pl.BlockSpec(shape, lambda b: (0,) * len(shape))

    kernel = functools.partial(decoder_block_kernel, n_heads=n_heads)

    # advisory cost estimate for XLA scheduling around the custom call
    flops = B * (8 * S * D * D + 4 * S * S * D + 4 * S * D * HID)
    transcendentals = B * (n_heads * S * S + S * HID + n_heads * S + S)
    bytes_accessed = 4 * (3 * B * S * D + B * S
                          + 4 * D * D + 2 * D * HID + 4 * D + HID + 3 * D)

    out = pl.pallas_call(
        kernel,
        out_shape=jax.ShapeDtypeStruct((B, S, D), jnp.float32),
        grid_spec=pltpu.PrefetchScalarGridSpec(
            num_scalar_prefetch=0,
            grid=(B,),
            in_specs=[
                pl.BlockSpec((1, S, D), lambda b: (b, 0, 0)),    # query rows
                pl.BlockSpec((1, S, D), lambda b: (b, 0, 0)),    # key/value rows
                pl.BlockSpec((1, 1, S), lambda b: (b, 0, 0)),    # mask bias
                wspec((D, D)), wspec((1, D)),                    # q_lin
                wspec((D, D)), wspec((1, D)),                    # k_lin
                wspec((D, D)), wspec((1, D)),                    # v_lin
                wspec((D, D)), wspec((1, D)),                    # out_lin
                wspec((D, HID)), wspec((1, HID)),                # ffn.lin1
                wspec((HID, D)), wspec((1, D)),                  # ffn.lin2
                wspec((1, D)), wspec((1, D)),                    # output_layer_norm
            ],
            out_specs=pl.BlockSpec((1, S, D), lambda b: (b, 0, 0)),
        ),
        compiler_params=pltpu.CompilerParams(
            dimension_semantics=("parallel",)),
        cost_estimate=pl.CostEstimate(flops=flops,
                                      transcendentals=transcendentals,
                                      bytes_accessed=bytes_accessed),
    )(q3, s3, mbias,
      wq_t, bq, wk_t, bk, wv_t, bv, wo_t, bo, w1_t, b1, w2_t, b2, g, beta)

    return out


def reference_jax(query, states, attn_mask, p, n_heads):
    """Pure-JAX reference mirroring the PyTorch forward (eval mode)."""
    B, S, D = query.shape
    dh = D // n_heads
    q = query @ p["wq"].T + p["bq"]
    k = states @ p["wk"].T + p["bk"]
    v = states @ p["wv"].T + p["bv"]

    def split_heads(x):
        return x.reshape(B, S, n_heads, dh).transpose(0, 2, 1, 3)

    qh = split_heads(q) / math.sqrt(dh)
    kh = split_heads(k)
    vh = split_heads(v)
    scores = jnp.einsum("bhqd,bhkd->bhqk", qh, kh)
    m = (attn_mask == 0).reshape(B, 1, 1, S)
    scores = jnp.where(m, -jnp.inf, scores)
    w = jax.nn.softmax(scores, axis=-1)
    ctx = jnp.einsum("bhqk,bhkd->bhqd", w, vh)
    ctx = ctx.transpose(0, 2, 1, 3).reshape(B, S, D)
    sa = ctx @ p["wo"].T + p["bo"]

    h1 = _gelu_new(sa @ p["w1"].T + p["b1"])
    ff = h1 @ p["w2"].T + p["b2"]
    x = ff + sa
    mean = x.mean(-1, keepdims=True)
    var = ((x - mean) ** 2).mean(-1, keepdims=True)
    return (x - mean) / jnp.sqrt(var + 1e-12) * p["ln_g"] + p["ln_b"]


if __name__ == "__main__":
    B, S, D, HID, N_HEADS = 2, 8, 32, 64, 4   # config: dim=qdim=32, hidden_dim=64, n_heads=4

    key = jax.random.PRNGKey(0)
    ks = jax.random.split(key, 16)

    params = {
        "wq": jax.random.normal(ks[0], (D, D), jnp.float32) * 0.02,
        "bq": jax.random.normal(ks[1], (D,), jnp.float32) * 0.02,
        "wk": jax.random.normal(ks[2], (D, D), jnp.float32) * 0.02,
        "bk": jax.random.normal(ks[3], (D,), jnp.float32) * 0.02,
        "wv": jax.random.normal(ks[4], (D, D), jnp.float32) * 0.02,
        "bv": jax.random.normal(ks[5], (D,), jnp.float32) * 0.02,
        "wo": jax.random.normal(ks[6], (D, D), jnp.float32) * 0.02,
        "bo": jax.random.normal(ks[7], (D,), jnp.float32) * 0.02,
        "w1": jax.random.normal(ks[8], (HID, D), jnp.float32) * 0.02,
        "b1": jax.random.normal(ks[9], (HID,), jnp.float32) * 0.02,
        "w2": jax.random.normal(ks[10], (D, HID), jnp.float32) * 0.02,
        "b2": jax.random.normal(ks[11], (D,), jnp.float32) * 0.02,
        "ln_g": jnp.ones((D,), jnp.float32),
        "ln_b": jnp.zeros((D,), jnp.float32),
    }

    query = jax.random.normal(ks[12], (B, S, D), jnp.float32)
    states = jax.random.normal(ks[13], (B, S, D), jnp.float32)
    # attn_mask: 1 = attend, 0 = masked (last two key positions masked)
    attn_mask = jnp.ones((B, S), jnp.float32).at[:, -2:].set(0.0)

    out = transformer_decoder_block(query, states, attn_mask, params, N_HEADS)
    out = jax.block_until_ready(out)

    ref = reference_jax(query, states, attn_mask, params, N_HEADS)
    assert out.shape == (B, S, D)
    assert jnp.allclose(out, ref, atol=1e-3, rtol=1e-3), "mismatch vs reference"

    print("KERNEL_OK")
</pallas_src>

<mosaic_0001>
module attributes {stable_mosaic.version = 11 : i64} {
  func.func @decoder_block_kernel(%arg0: i32, %arg1: memref<1x8x32xf32, #tpu.memory_space<vmem>>, %arg2: memref<1x8x32xf32, #tpu.memory_space<vmem>>, %arg3: memref<1x1x8xf32, #tpu.memory_space<vmem>>, %arg4: memref<32x32xf32, #tpu.memory_space<vmem>>, %arg5: memref<1x32xf32, #tpu.memory_space<vmem>>, %arg6: memref<32x32xf32, #tpu.memory_space<vmem>>, %arg7: memref<1x32xf32, #tpu.memory_space<vmem>>, %arg8: memref<32x32xf32, #tpu.memory_space<vmem>>, %arg9: memref<1x32xf32, #tpu.memory_space<vmem>>, %arg10: memref<32x32xf32, #tpu.memory_space<vmem>>, %arg11: memref<1x32xf32, #tpu.memory_space<vmem>>, %arg12: memref<32x64xf32, #tpu.memory_space<vmem>>, %arg13: memref<1x64xf32, #tpu.memory_space<vmem>>, %arg14: memref<64x32xf32, #tpu.memory_space<vmem>>, %arg15: memref<1x32xf32, #tpu.memory_space<vmem>>, %arg16: memref<1x32xf32, #tpu.memory_space<vmem>>, %arg17: memref<1x32xf32, #tpu.memory_space<vmem>>, %arg18: memref<1x8x32xf32, #tpu.memory_space<vmem>>) attributes {dimension_semantics = [#tpu.dimension_semantics<parallel>], iteration_bounds = array<i64: 2>, scalar_prefetch = 0 : i64, scratch_operands = 0 : i64, tpu.core_type = #tpu.core_type<tc>, window_params = [{transform_indices = @transform_0, window_bounds = array<i64: 1, 8, 32>}, {transform_indices = @transform_1, window_bounds = array<i64: 1, 8, 32>}, {transform_indices = @transform_2, window_bounds = array<i64: 1, 1, 8>}, {pipeline_mode = #tpu.pipeline_mode<synchronous>, transform_indices = @transform_3, window_bounds = array<i64: 32, 32>}, {pipeline_mode = #tpu.pipeline_mode<synchronous>, transform_indices = @transform_4, window_bounds = array<i64: 1, 32>}, {pipeline_mode = #tpu.pipeline_mode<synchronous>, transform_indices = @transform_5, window_bounds = array<i64: 32, 32>}, {pipeline_mode = #tpu.pipeline_mode<synchronous>, transform_indices = @transform_6, window_bounds = array<i64: 1, 32>}, {pipeline_mode = #tpu.pipeline_mode<synchronous>, transform_indices = @transform_7, window_bounds = array<i64: 32, 32>}, {pipeline_mode = #tpu.pipeline_mode<synchronous>, transform_indices = @transform_8, window_bounds = array<i64: 1, 32>}, {pipeline_mode = #tpu.pipeline_mode<synchronous>, transform_indices = @transform_9, window_bounds = array<i64: 32, 32>}, {pipeline_mode = #tpu.pipeline_mode<synchronous>, transform_indices = @transform_10, window_bounds = array<i64: 1, 32>}, {pipeline_mode = #tpu.pipeline_mode<synchronous>, transform_indices = @transform_11, window_bounds = array<i64: 32, 64>}, {pipeline_mode = #tpu.pipeline_mode<synchronous>, transform_indices = @transform_12, window_bounds = array<i64: 1, 64>}, {pipeline_mode = #tpu.pipeline_mode<synchronous>, transform_indices = @transform_13, window_bounds = array<i64: 64, 32>}, {pipeline_mode = #tpu.pipeline_mode<synchronous>, transform_indices = @transform_14, window_bounds = array<i64: 1, 32>}, {pipeline_mode = #tpu.pipeline_mode<synchronous>, transform_indices = @transform_15, window_bounds = array<i64: 1, 32>}, {pipeline_mode = #tpu.pipeline_mode<synchronous>, transform_indices = @transform_16, window_bounds = array<i64: 1, 32>}, {transform_indices = @transform_17, window_bounds = array<i64: 1, 8, 32>}]} {
    %c0 = arith.constant 0 : index
    %c0_0 = arith.constant 0 : index
    %c0_1 = arith.constant 0 : index
    %0 = vector.load %arg1[%c0, %c0_0, %c0_1] : memref<1x8x32xf32, #tpu.memory_space<vmem>>, vector<1x8x32xf32>
    %1 = vector.shape_cast %0 : vector<1x8x32xf32> to vector<8x32xf32>
    %c0_2 = arith.constant 0 : index
    %c0_3 = arith.constant 0 : index
    %c0_4 = arith.constant 0 : index
    %2 = vector.load %arg2[%c0_2, %c0_3, %c0_4] : memref<1x8x32xf32, #tpu.memory_space<vmem>>, vector<1x8x32xf32>
    %3 = vector.shape_cast %2 : vector<1x8x32xf32> to vector<8x32xf32>
    %c0_5 = arith.constant 0 : index
    %c0_6 = arith.constant 0 : index
    %c0_7 = arith.constant 0 : index
    %4 = vector.load %arg3[%c0_5, %c0_6, %c0_7] : memref<1x1x8xf32, #tpu.memory_space<vmem>>, vector<1x1x8xf32>
    %c0_8 = arith.constant 0 : index
    %c0_9 = arith.constant 0 : index
    %5 = vector.load %arg4[%c0_8, %c0_9] : memref<32x32xf32, #tpu.memory_space<vmem>>, vector<32x32xf32>
    %cst = arith.constant dense<0.000000e+00> : vector<8x32xf32>
    %6 = tpu.matmul %1, %5, %cst {dimension_numbers = #tpu.dot_dimension_numbers<[1], [0], [0], [1], [0, 0, 1, 1], [], []>} : vector<8x32xf32>, vector<32x32xf32>, vector<8x32xf32> -> vector<8x32xf32>
    %c0_10 = arith.constant 0 : index
    %c0_11 = arith.constant 0 : index
    %7 = vector.load %arg5[%c0_10, %c0_11] : memref<1x32xf32, #tpu.memory_space<vmem>>, vector<1x32xf32>
    %8 = vector.broadcast %7 : vector<1x32xf32> to vector<8x32xf32>
    %9 = arith.addf %6, %8 : vector<8x32xf32>
    %c0_12 = arith.constant 0 : index
    %c0_13 = arith.constant 0 : index
    %10 = vector.load %arg6[%c0_12, %c0_13] : memref<32x32xf32, #tpu.memory_space<vmem>>, vector<32x32xf32>
    %cst_14 = arith.constant dense<0.000000e+00> : vector<8x32xf32>
    %11 = tpu.matmul %3, %10, %cst_14 {dimension_numbers = #tpu.dot_dimension_numbers<[1], [0], [0], [1], [0, 0, 1, 1], [], []>} : vector<8x32xf32>, vector<32x32xf32>, vector<8x32xf32> -> vector<8x32xf32>
    %c0_15 = arith.constant 0 : index
    %c0_16 = arith.constant 0 : index
    %12 = vector.load %arg7[%c0_15, %c0_16] : memref<1x32xf32, #tpu.memory_space<vmem>>, vector<1x32xf32>
    %13 = vector.broadcast %12 : vector<1x32xf32> to vector<8x32xf32>
    %14 = arith.addf %11, %13 : vector<8x32xf32>
    %c0_17 = arith.constant 0 : index
    %c0_18 = arith.constant 0 : index
    %15 = vector.load %arg8[%c0_17, %c0_18] : memref<32x32xf32, #tpu.memory_space<vmem>>, vector<32x32xf32>
    %cst_19 = arith.constant dense<0.000000e+00> : vector<8x32xf32>
    %16 = tpu.matmul %3, %15, %cst_19 {dimension_numbers = #tpu.dot_dimension_numbers<[1], [0], [0], [1], [0, 0, 1, 1], [], []>} : vector<8x32xf32>, vector<32x32xf32>, vector<8x32xf32> -> vector<8x32xf32>
    %c0_20 = arith.constant 0 : index
    %c0_21 = arith.constant 0 : index
    %17 = vector.load %arg9[%c0_20, %c0_21] : memref<1x32xf32, #tpu.memory_space<vmem>>, vector<1x32xf32>
    %18 = vector.broadcast %17 : vector<1x32xf32> to vector<8x32xf32>
    %19 = arith.addf %16, %18 : vector<8x32xf32>
    %cst_22 = arith.constant 0.353553385 : f32
    %20 = vector.broadcast %cst_22 : f32 to vector<8x32xf32>
    %21 = arith.mulf %9, %20 : vector<8x32xf32>
    %22 = vector.shape_cast %21 : vector<8x32xf32> to vector<8x4x8xf32>
    %23 = vector.shape_cast %14 : vector<8x32xf32> to vector<8x4x8xf32>
    %24 = vector.shape_cast %19 : vector<8x32xf32> to vector<8x4x8xf32>
    "tpu.trace_start"() <{level = 10 : i32, message = "qhd,khd->hqk"}> : () -> ()
    %cst_23 = arith.constant dense<0.000000e+00> : vector<4x8x8xf32>
    %25 = tpu.matmul %22, %23, %cst_23 {dimension_numbers = #tpu.dot_dimension_numbers<[2], [2], [0], [0], [0, 1, 0, 0, 1, 0], [1], [1]>} : vector<8x4x8xf32>, vector<8x4x8xf32>, vector<4x8x8xf32> -> vector<4x8x8xf32>
    "tpu.trace_stop"() : () -> ()
    %26 = vector.broadcast %4 : vector<1x1x8xf32> to vector<4x8x8xf32>
    %27 = arith.addf %25, %26 : vector<4x8x8xf32>
    %cst_24 = arith.constant dense<0xFF800000> : vector<4x8xf32>
    %28 = vector.multi_reduction <maximumf>, %27, %cst_24 [2] : vector<4x8x8xf32> to vector<4x8xf32>
    %29 = vector.shape_cast %28 : vector<4x8xf32> to vector<4x8x1xf32>
    %30 = vector.broadcast %29 : vector<4x8x1xf32> to vector<4x8x8xf32>
    %31 = arith.subf %27, %30 : vector<4x8x8xf32>
    %32 = math.exp %31 : vector<4x8x8xf32>
    %cst_25 = arith.constant dense<0.000000e+00> : vector<4x8xf32>
    %33 = vector.multi_reduction <add>, %32, %cst_25 [2] : vector<4x8x8xf32> to vector<4x8xf32>
    %34 = vector.shape_cast %33 : vector<4x8xf32> to vector<4x8x1xf32>
    %35 = tpu.reciprocal %34 {approx = true} : vector<4x8x1xf32> -> vector<4x8x1xf32>
    %36 = arith.mulf %34, %35 : vector<4x8x1xf32>
    %cst_26 = arith.constant 2.000000e+00 : f32
    %37 = vector.broadcast %cst_26 : f32 to vector<4x8x1xf32>
    %38 = arith.subf %37, %36 : vector<4x8x1xf32>
    %39 = arith.mulf %35, %38 : vector<4x8x1xf32>
    %40 = vector.broadcast %39 : vector<4x8x1xf32> to vector<4x8x8xf32>
    %41 = arith.mulf %32, %40 : vector<4x8x8xf32>
    "tpu.trace_start"() <{level = 10 : i32, message = "hqk,khd->qhd"}> : () -> ()
    %cst_27 = arith.constant dense<0.000000e+00> : vector<4x8x8xf32>
    %42 = tpu.matmul %24, %41, %cst_27 {dimension_numbers = #tpu.dot_dimension_numbers<[0], [2], [2], [1], [0, 1, 0, 2, 1, 1], [1], [0]>} : vector<8x4x8xf32>, vector<4x8x8xf32>, vector<4x8x8xf32> -> vector<4x8x8xf32>
    %43 = tpu.transpose %42, [2, 0, 1] : vector<4x8x8xf32> -> vector<8x4x8xf32>
    "tpu.trace_stop"() : () -> ()
    %44 = vector.shape_cast %43 : vector<8x4x8xf32> to vector<8x32xf32>
    %c0_28 = arith.constant 0 : index
    %c0_29 = arith.constant 0 : index
    %45 = vector.load %arg10[%c0_28, %c0_29] : memref<32x32xf32, #tpu.memory_space<vmem>>, vector<32x32xf32>
    %cst_30 = arith.constant dense<0.000000e+00> : vector<8x32xf32>
    %46 = tpu.matmul %44, %45, %cst_30 {dimension_numbers = #tpu.dot_dimension_numbers<[1], [0], [0], [1], [0, 0, 1, 1], [], []>} : vector<8x32xf32>, vector<32x32xf32>, vector<8x32xf32> -> vector<8x32xf32>
    %c0_31 = arith.constant 0 : index
    %c0_32 = arith.constant 0 : index
    %47 = vector.load %arg11[%c0_31, %c0_32] : memref<1x32xf32, #tpu.memory_space<vmem>>, vector<1x32xf32>
    %48 = vector.broadcast %47 : vector<1x32xf32> to vector<8x32xf32>
    %49 = arith.addf %46, %48 : vector<8x32xf32>
    %c0_33 = arith.constant 0 : index
    %c0_34 = arith.constant 0 : index
    %50 = vector.load %arg12[%c0_33, %c0_34] : memref<32x64xf32, #tpu.memory_space<vmem>>, vector<32x64xf32>
    %cst_35 = arith.constant dense<0.000000e+00> : vector<8x64xf32>
    %51 = tpu.matmul %49, %50, %cst_35 {dimension_numbers = #tpu.dot_dimension_numbers<[1], [0], [0], [1], [0, 0, 1, 1], [], []>} : vector<8x32xf32>, vector<32x64xf32>, vector<8x64xf32> -> vector<8x64xf32>
    %c0_36 = arith.constant 0 : index
    %c0_37 = arith.constant 0 : index
    %52 = vector.load %arg13[%c0_36, %c0_37] : memref<1x64xf32, #tpu.memory_space<vmem>>, vector<1x64xf32>
    %53 = vector.broadcast %52 : vector<1x64xf32> to vector<8x64xf32>
    %54 = arith.addf %51, %53 : vector<8x64xf32>
    %cst_38 = arith.constant 5.000000e-01 : f32
    %55 = vector.broadcast %cst_38 : f32 to vector<8x64xf32>
    %56 = arith.mulf %55, %54 : vector<8x64xf32>
    %cst_39 = arith.constant 4.471500e-02 : f32
    %57 = vector.broadcast %cst_39 : f32 to vector<8x64xf32>
    %58 = arith.mulf %57, %54 : vector<8x64xf32>
    %59 = arith.mulf %58, %54 : vector<8x64xf32>
    %60 = arith.mulf %59, %54 : vector<8x64xf32>
    %61 = arith.addf %54, %60 : vector<8x64xf32>
    %cst_40 = arith.constant 0.797884583 : f32
    %62 = vector.broadcast %cst_40 : f32 to vector<8x64xf32>
    %63 = arith.mulf %62, %61 : vector<8x64xf32>
    %64 = math.tanh %63 : vector<8x64xf32>
    %cst_41 = arith.constant 1.000000e+00 : f32
    %65 = vector.broadcast %cst_41 : f32 to vector<8x64xf32>
    %66 = arith.addf %65, %64 : vector<8x64xf32>
    %67 = arith.mulf %56, %66 : vector<8x64xf32>
    %c0_42 = arith.constant 0 : index
    %c0_43 = arith.constant 0 : index
    %68 = vector.load %arg14[%c0_42, %c0_43] : memref<64x32xf32, #tpu.memory_space<vmem>>, vector<64x32xf32>
    %cst_44 = arith.constant dense<0.000000e+00> : vector<8x32xf32>
    %69 = tpu.matmul %67, %68, %cst_44 {dimension_numbers = #tpu.dot_dimension_numbers<[1], [0], [0], [1], [0, 0, 1, 1], [], []>} : vector<8x64xf32>, vector<64x32xf32>, vector<8x32xf32> -> vector<8x32xf32>
    %c0_45 = arith.constant 0 : index
    %c0_46 = arith.constant 0 : index
    %70 = vector.load %arg15[%c0_45, %c0_46] : memref<1x32xf32, #tpu.memory_space<vmem>>, vector<1x32xf32>
    %71 = vector.broadcast %70 : vector<1x32xf32> to vector<8x32xf32>
    %72 = arith.addf %69, %71 : vector<8x32xf32>
    %73 = arith.addf %72, %49 : vector<8x32xf32>
    %cst_47 = arith.constant dense<0.000000e+00> : vector<8xf32>
    %74 = vector.multi_reduction <add>, %73, %cst_47 [1] : vector<8x32xf32> to vector<8xf32>
    %75 = vector.shape_cast %74 : vector<8xf32> to vector<8x1xf32>
    %cst_48 = arith.constant 3.200000e+01 : f32
    %76 = vector.broadcast %cst_48 : f32 to vector<8x1xf32>
    %77 = arith.divf %75, %76 : vector<8x1xf32>
    %78 = vector.broadcast %77 : vector<8x1xf32> to vector<8x32xf32>
    %79 = arith.subf %73, %78 : vector<8x32xf32>
    %80 = vector.broadcast %77 : vector<8x1xf32> to vector<8x32xf32>
    %81 = arith.subf %73, %80 : vector<8x32xf32>
    %82 = arith.mulf %79, %81 : vector<8x32xf32>
    %cst_49 = arith.constant dense<0.000000e+00> : vector<8xf32>
    %83 = vector.multi_reduction <add>, %82, %cst_49 [1] : vector<8x32xf32> to vector<8xf32>
    %84 = vector.shape_cast %83 : vector<8xf32> to vector<8x1xf32>
    %cst_50 = arith.constant 3.200000e+01 : f32
    %85 = vector.broadcast %cst_50 : f32 to vector<8x1xf32>
    %86 = arith.divf %84, %85 : vector<8x1xf32>
    %87 = vector.broadcast %77 : vector<8x1xf32> to vector<8x32xf32>
    %88 = arith.subf %73, %87 : vector<8x32xf32>
    %cst_51 = arith.constant 9.99999996E-13 : f32
    %89 = vector.broadcast %cst_51 : f32 to vector<8x1xf32>
    %90 = arith.addf %86, %89 : vector<8x1xf32>
    %91 = math.rsqrt %90 : vector<8x1xf32>
    %92 = vector.broadcast %91 : vector<8x1xf32> to vector<8x32xf32>
    %93 = arith.mulf %88, %92 : vector<8x32xf32>
    %c0_52 = arith.constant 0 : index
    %c0_53 = arith.constant 0 : index
    %94 = vector.load %arg16[%c0_52, %c0_53] : memref<1x32xf32, #tpu.memory_space<vmem>>, vector<1x32xf32>
    %95 = vector.broadcast %94 : vector<1x32xf32> to vector<8x32xf32>
    %96 = arith.mulf %93, %95 : vector<8x32xf32>
    %c0_54 = arith.constant 0 : index
    %c0_55 = arith.constant 0 : index
    %97 = vector.load %arg17[%c0_54, %c0_55] : memref<1x32xf32, #tpu.memory_space<vmem>>, vector<1x32xf32>
    %98 = vector.broadcast %97 : vector<1x32xf32> to vector<8x32xf32>
    %99 = arith.addf %96, %98 : vector<8x32xf32>
    %c0_56 = arith.constant 0 : index
    %c0_57 = arith.constant 0 : index
    %c0_58 = arith.constant 0 : index
    %100 = vector.load %arg18[%c0_56, %c0_57, %c0_58] : memref<1x8x32xf32, #tpu.memory_space<vmem>>, vector<1x8x32xf32>
    %101 = vector.shape_cast %100 : vector<1x8x32xf32> to vector<8x32xf32>
    %102 = vector.shape_cast %99 : vector<8x32xf32> to vector<1x8x32xf32>
    tpu.vector_store %arg18[%c0_56, %c0_57, %c0_58], %102 {strides = array<i32>} : memref<1x8x32xf32, #tpu.memory_space<vmem>>, vector<1x8x32xf32>,
    return
  }
  func.func @transform_0(%arg0: i32) -> (i32, i32, i32) {
    %c0_i32 = arith.constant 0 : i32
    %c0_i32_0 = arith.constant 0 : i32
    %c0_i32_1 = arith.constant 0 : i32
    return %arg0, %c0_i32, %c0_i32_0 : i32, i32, i32
  }
  func.func @transform_1(%arg0: i32) -> (i32, i32, i32) {
    %c0_i32 = arith.constant 0 : i32
    %c0_i32_0 = arith.constant 0 : i32
    %c0_i32_1 = arith.constant 0 : i32
    return %arg0, %c0_i32, %c0_i32_0 : i32, i32, i32
  }
  func.func @transform_2(%arg0: i32) -> (i32, i32, i32) {
    %c0_i32 = arith.constant 0 : i32
    %c0_i32_0 = arith.constant 0 : i32
    %c0_i32_1 = arith.constant 0 : i32
    return %arg0, %c0_i32, %c0_i32_0 : i32, i32, i32
  }
  func.func @transform_3(%arg0: i32) -> (i32, i32) {
    %c0_i32 = arith.constant 0 : i32
    %c0_i32_0 = arith.constant 0 : i32
    %c0_i32_1 = arith.constant 0 : i32
    return %c0_i32, %c0_i32_0 : i32, i32
  }
  func.func @transform_4(%arg0: i32) -> (i32, i32) {
    %c0_i32 = arith.constant 0 : i32
    %c0_i32_0 = arith.constant 0 : i32
    %c0_i32_1 = arith.constant 0 : i32
    return %c0_i32, %c0_i32_0 : i32, i32
  }
  func.func @transform_5(%arg0: i32) -> (i32, i32) {
    %c0_i32 = arith.constant 0 : i32
    %c0_i32_0 = arith.constant 0 : i32
    %c0_i32_1 = arith.constant 0 : i32
    return %c0_i32, %c0_i32_0 : i32, i32
  }
  func.func @transform_6(%arg0: i32) -> (i32, i32) {
    %c0_i32 = arith.constant 0 : i32
    %c0_i32_0 = arith.constant 0 : i32
    %c0_i32_1 = arith.constant 0 : i32
    return %c0_i32, %c0_i32_0 : i32, i32
  }
  func.func @transform_7(%arg0: i32) -> (i32, i32) {
    %c0_i32 = arith.constant 0 : i32
    %c0_i32_0 = arith.constant 0 : i32
    %c0_i32_1 = arith.constant 0 : i32
    return %c0_i32, %c0_i32_0 : i32, i32
  }
  func.func @transform_8(%arg0: i32) -> (i32, i32) {
    %c0_i32 = arith.constant 0 : i32
    %c0_i32_0 = arith.constant 0 : i32
    %c0_i32_1 = arith.constant 0 : i32
    return %c0_i32, %c0_i32_0 : i32, i32
  }
  func.func @transform_9(%arg0: i32) -> (i32, i32) {
    %c0_i32 = arith.constant 0 : i32
    %c0_i32_0 = arith.constant 0 : i32
    %c0_i32_1 = arith.constant 0 : i32
    return %c0_i32, %c0_i32_0 : i32, i32
  }
  func.func @transform_10(%arg0: i32) -> (i32, i32) {
    %c0_i32 = arith.constant 0 : i32
    %c0_i32_0 = arith.constant 0 : i32
    %c0_i32_1 = arith.constant 0 : i32
    return %c0_i32, %c0_i32_0 : i32, i32
  }
  func.func @transform_11(%arg0: i32) -> (i32, i32) {
    %c0_i32 = arith.constant 0 : i32
    %c0_i32_0 = arith.constant 0 : i32
    %c0_i32_1 = arith.constant 0 : i32
    return %c0_i32, %c0_i32_0 : i32, i32
  }
  func.func @transform_12(%arg0: i32) -> (i32, i32) {
    %c0_i32 = arith.constant 0 : i32
    %c0_i32_0 = arith.constant 0 : i32
    %c0_i32_1 = arith.constant 0 : i32
    return %c0_i32, %c0_i32_0 : i32, i32
  }
  func.func @transform_13(%arg0: i32) -> (i32, i32) {
    %c0_i32 = arith.constant 0 : i32
    %c0_i32_0 = arith.constant 0 : i32
    %c0_i32_1 = arith.constant 0 : i32
    return %c0_i32, %c0_i32_0 : i32, i32
  }
  func.func @transform_14(%arg0: i32) -> (i32, i32) {
    %c0_i32 = arith.constant 0 : i32
    %c0_i32_0 = arith.constant 0 : i32
    %c0_i32_1 = arith.constant 0 : i32
    return %c0_i32, %c0_i32_0 : i32, i32
  }
  func.func @transform_15(%arg0: i32) -> (i32, i32) {
    %c0_i32 = arith.constant 0 : i32
    %c0_i32_0 = arith.constant 0 : i32
    %c0_i32_1 = arith.constant 0 : i32
    return %c0_i32, %c0_i32_0 : i32, i32
  }
  func.func @transform_16(%arg0: i32) -> (i32, i32) {
    %c0_i32 = arith.constant 0 : i32
    %c0_i32_0 = arith.constant 0 : i32
    %c0_i32_1 = arith.constant 0 : i32
    return %c0_i32, %c0_i32_0 : i32, i32
  }
  func.func @transform_17(%arg0: i32) -> (i32, i32, i32) {
    %c0_i32 = arith.constant 0 : i32
    %c0_i32_0 = arith.constant 0 : i32
    %c0_i32_1 = arith.constant 0 : i32
    return %arg0, %c0_i32, %c0_i32_0 : i32, i32, i32
  }
}

</mosaic_0001>

<llo_original>
// kernel: tpu_custom_call.1
$region0: #{tpu_custom_call.1}
  #allocation0 [shape = 'u32[]', space=smem, size = 0x4, offset = 0x4, fixed_abs, tag = 'smem constant byte address 0x4 - core index']
  #allocation1 [shape = 'u32[144,128]{1,0:T(1,128)}', space=vmem, size = 0x12000, scoped, tag = 'internal scratch']
  %s0 = inlined_call_operand.hbm [shape: f32[2,8,32], index: 0, kind: input, shape index: {}]
  %s1 = inlined_call_operand.hbm [shape: f32[2,8,32], index: 1, kind: input, shape index: {}]
  %s2 = inlined_call_operand.vmem [shape: f32[2,1,8], index: 2, kind: input, shape index: {}]
  %s3 = inlined_call_operand.vmem [shape: f32[32,32], index: 3, kind: input, shape index: {}]
  %s4 = inlined_call_operand.vmem [shape: f32[1,32], index: 4, kind: input, shape index: {}]
  %s5 = inlined_call_operand.vmem [shape: f32[32,32], index: 5, kind: input, shape index: {}]
  %s6 = inlined_call_operand.vmem [shape: f32[1,32], index: 6, kind: input, shape index: {}]
  %s7 = inlined_call_operand.vmem [shape: f32[32,32], index: 7, kind: input, shape index: {}]
  %s8 = inlined_call_operand.vmem [shape: f32[1,32], index: 8, kind: input, shape index: {}]
  %s9 = inlined_call_operand.hbm [shape: f32[32,32], index: 9, kind: input, shape index: {}]
  %s10 = inlined_call_operand.vmem [shape: f32[1,32], index: 10, kind: input, shape index: {}]
  %s11 = inlined_call_operand.hbm [shape: f32[32,64], index: 11, kind: input, shape index: {}]
  %s12 = inlined_call_operand.vmem [shape: f32[1,64], index: 12, kind: input, shape index: {}]
  %s13 = inlined_call_operand.vmem [shape: f32[64,32], index: 13, kind: input, shape index: {}]
  %s14 = inlined_call_operand.vmem [shape: f32[1,32], index: 14, kind: input, shape index: {}]
  %s15 = inlined_call_operand.vmem [shape: f32[1,32], index: 15, kind: input, shape index: {}]
  %s16 = inlined_call_operand.vmem [shape: f32[1,32], index: 16, kind: input, shape index: {}]
  %s17 = inlined_call_operand.hbm [shape: f32[2,8,32], index: 17, kind: output, shape index: {}]
  %s18 = sld [smem:[#allocation0]]
  $region117: #{tpu_custom_call.1} parent=0
    _
  %s20 = ssub.s32 1, %s18
  %s21 = scalar_select 0, %s20, %s18
  $region1: #{tpu_custom_call.1} parent=0
    #allocation2 [shape = 'u8[8192]{0}', space=vmem, size = 0x2000, scoped, tag = 'input window, operand 0']
    #allocation3 [shape = 's32[2]{0}', space=sflag, size = 0x8, scoped, tag = 'scoped memory for tpu_custom_call.1']
    #allocation4 [shape = 's32[2]{0}', space=sflag, size = 0x8, scoped, tag = 'scoped memory for tpu_custom_call.1']
    #allocation5 [shape = 'u8[8192]{0}', space=vmem, size = 0x2000, scoped, tag = 'input window, operand 1']
    #allocation6 [shape = 's32[2]{0}', space=sflag, size = 0x8, scoped, tag = 'scoped memory for tpu_custom_call.1']
    #allocation7 [shape = 'u8[16384]{0}', space=vmem, size = 0x4000, scoped, tag = 'input window, operand 9, single buffered']
    #allocation8 [shape = 'u8[16384]{0}', space=vmem, size = 0x4000, scoped, tag = 'input window, operand 11, single buffered']
    #allocation9 [shape = 's32[1]{0}', space=sflag, size = 0x4, scoped, tag = 'scoped memory for tpu_custom_call.1']
    #allocation10 [shape = 'u8[8192]{0}', space=vmem, size = 0x2000, scoped, tag = 'output window, operand 0']
    %22 = vsyncpa [#allocation3], 0
    %s23 = scalar_lea.sflag [#allocation3], 1
    %24 = vsyncpa %s23, 0
    %25 = vsyncpa [#allocation6], 0
    %s26 = scalar_lea.sflag [#allocation6], 1
    %27 = vsyncpa %s26, 0
    %28 = vsyncpa [#allocation9], 0
    %29 = vsyncpa [#allocation4], 0
    %s30 = scalar_lea.sflag [#allocation4], 1
    %31 = vsyncpa %s30, 0
    loop: start=0, step=1, limit=4
    $region2: #{tpu_custom_call.1} parent=1 // loop_pre_header
      _
    $region3: #{tpu_custom_call.1} parent=1 // loop_header
      %s33 = sphi 0, %s37
      %p34 = scmp.ge.s32.totalorder %s33, 4
      %s43 = sphi 0, %s45
      %s46 = sphi 0, %s43
      %s47 = sphi 0, %s46
      %s63 = sphi 0, %s47
      %s69 = sphi 0, %s71
      %s72 = sphi 0, %s69
      %s73 = sphi 0, %s72
      %s89 = sphi 0, %s73
      %s95 = sphi 0, %s97
      %s98 = sphi 0, %s95
      %s99 = sphi 0, %s98
      %s115 = sphi 0, %s99
      %s119 = sphi 0, %s119
      %s121 = sphi 0, %s119
      %s122 = sphi 0, %s121
      %s136 = sphi 0, %s122
      %s140 = sphi 0, %s140
      %s142 = sphi 0, %s140
      %s143 = sphi 0, %s142
      %s157 = sphi 0, %s143
      %s161 = sphi 0, %s161
      %s163 = sphi 0, %s161
      %s164 = sphi 0, %s163
      %s178 = sphi 0, %s164
      %s182 = sphi 0, %s182
      %s184 = sphi 0, %s182
      %s185 = sphi 0, %s184
      %s199 = sphi 0, %s185
      %s203 = sphi 0, %s203
      %s205 = sphi 0, %s203
      %s206 = sphi 0, %s205
      %s220 = sphi 0, %s206
      %s224 = sphi 0, %s224
      %s226 = sphi 0, %s224
      %s227 = sphi 0, %s226
      %s241 = sphi 0, %s227
      %s245 = sphi 0, %s245
      %s247 = sphi 0, %s245
      %s248 = sphi 0, %s247
      %s262 = sphi 0, %s248
      %s266 = sphi 0, %s266
      %s268 = sphi 0, %s266
      %s269 = sphi 0, %s268
      %s283 = sphi 0, %s269
      %s287 = sphi 0, %s287
      %s289 = sphi 0, %s287
      %s290 = sphi 0, %s289
      %s304 = sphi 0, %s290
      %s308 = sphi 0, %s308
      %s310 = sphi 0, %s308
      %s311 = sphi 0, %s310
      %s325 = sphi 0, %s311
      %s329 = sphi 0, %s329
      %s331 = sphi 0, %s329
      %s332 = sphi 0, %s331
      %s346 = sphi 0, %s332
      %s350 = sphi 0, %s350
      %s352 = sphi 0, %s350
      %s353 = sphi 0, %s352
      %s367 = sphi 0, %s353
      %s371 = sphi 0, %s371
      %s373 = sphi 0, %s371
      %s374 = sphi 0, %s373
      %s388 = sphi 0, %s374
      %s392 = sphi 0, %s392
      %s394 = sphi 0, %s392
      %s395 = sphi 0, %s394
      %s409 = sphi 0, %s395
      %s415 = sphi 0, %s417
      %s418 = sphi 0, %s415
      %s419 = sphi 0, %s418
      %s435 = sphi 0, %s419
    $region4: #{tpu_custom_call.1} parent=1 // loop_header_branch
      %36 = sbr.rel (%p34) target = $region8
    $region5: #{tpu_custom_call.1} parent=1 // loop_body
      %s38 = ssub.s32 %s33, 1
      %s39 = ssub.s32 %s33, 2
      %s40 = sadd.s32 %s33, 1
      %s41 = ssub.s32 %s33, %s40
      %p42 = scmp.eq.s32.totalorder %s41, 0
      %s44 = sadd.s32 %s43, 1
      %s45 = scalar_select %p42, %s43, %s44
      %p48 = pneg %p42
      %p49 = scmp.eq.s32.totalorder %s33, 1
      %p50 = por %p48, %p49
      %p51 = scmp.ne.s32.totalorder %s43, %s46
      %p52 = scmp.eq.s32.totalorder %s33, 0
      %p53 = por %p51, %p52
      %p54 = scmp.ne.s32.totalorder %s43, %s46
      %p55 = scmp.eq.s32.totalorder %s38, 1
      %p56 = por %p54, %p55
      %p57 = scmp.ne.s32.totalorder %s46, %s47
      %p58 = scmp.eq.s32.totalorder %s38, 0
      %p59 = por %p57, %p58
      %p60 = scmp.ne.s32.totalorder %s46, %s47
      %p61 = scmp.eq.s32.totalorder %s39, 1
      %p62 = por %p60, %p61
      %p64 = scmp.ne.s32.totalorder %s47, %s63
      %p65 = scmp.eq.s32.totalorder %s39, 0
      %p66 = por %p64, %p65
      %s67 = ssub.s32 %s33, %s40
      %p68 = scmp.eq.s32.totalorder %s67, 0
      %s70 = sadd.s32 %s69, 1
      %s71 = scalar_select %p68, %s69, %s70
      %p74 = pneg %p68
      %p75 = scmp.eq.s32.totalorder %s33, 1
      %p76 = por %p74, %p75
      %p77 = scmp.ne.s32.totalorder %s69, %s72
      %p78 = scmp.eq.s32.totalorder %s33, 0
      %p79 = por %p77, %p78
      %p80 = scmp.ne.s32.totalorder %s69, %s72
      %p81 = scmp.eq.s32.totalorder %s38, 1
      %p82 = por %p80, %p81
      %p83 = scmp.ne.s32.totalorder %s72, %s73
      %p84 = scmp.eq.s32.totalorder %s38, 0
      %p85 = por %p83, %p84
      %p86 = scmp.ne.s32.totalorder %s72, %s73
      %p87 = scmp.eq.s32.totalorder %s39, 1
      %p88 = por %p86, %p87
      %p90 = scmp.ne.s32.totalorder %s73, %s89
      %p91 = scmp.eq.s32.totalorder %s39, 0
      %p92 = por %p90, %p91
      %s93 = ssub.s32 %s33, %s40
      %p94 = scmp.eq.s32.totalorder %s93, 0
      %s96 = sadd.s32 %s95, 1
      %s97 = scalar_select %p94, %s95, %s96
      %p100 = pneg %p94
      %p101 = scmp.eq.s32.totalorder %s33, 1
      %p102 = por %p100, %p101
      %p103 = scmp.ne.s32.totalorder %s95, %s98
      %p104 = scmp.eq.s32.totalorder %s33, 0
      %p105 = por %p103, %p104
      %p106 = scmp.ne.s32.totalorder %s95, %s98
      %p107 = scmp.eq.s32.totalorder %s38, 1
      %p108 = por %p106, %p107
      %p109 = scmp.ne.s32.totalorder %s98, %s99
      %p110 = scmp.eq.s32.totalorder %s38, 0
      %p111 = por %p109, %p110
      %p112 = scmp.ne.s32.totalorder %s98, %s99
      %p113 = scmp.eq.s32.totalorder %s39, 1
      %p114 = por %p112, %p113
      %p116 = scmp.ne.s32.totalorder %s99, %s115
      %p117 = scmp.eq.s32.totalorder %s39, 0
      %p118 = por %p116, %p117
      %s120 = sadd.s32 %s119, 1
      %p123 = scmp.eq.s32.totalorder %s33, 1
      %p124 = scmp.ne.s32.totalorder %s119, %s121
      %p125 = scmp.eq.s32.totalorder %s33, 0
      %p126 = por %p124, %p125
      %p127 = scmp.ne.s32.totalorder %s119, %s121
      %p128 = scmp.eq.s32.totalorder %s38, 1
      %p129 = por %p127, %p128
      %p130 = scmp.ne.s32.totalorder %s121, %s122
      %p131 = scmp.eq.s32.totalorder %s38, 0
      %p132 = por %p130, %p131
      %p133 = scmp.ne.s32.totalorder %s121, %s122
      %p134 = scmp.eq.s32.totalorder %s39, 1
      %p135 = por %p133, %p134
      %p137 = scmp.ne.s32.totalorder %s122, %s136
      %p138 = scmp.eq.s32.totalorder %s39, 0
      %p139 = por %p137, %p138
      %s141 = sadd.s32 %s140, 1
      %p144 = scmp.eq.s32.totalorder %s33, 1
      %p145 = scmp.ne.s32.totalorder %s140, %s142
      %p146 = scmp.eq.s32.totalorder %s33, 0
      %p147 = por %p145, %p146
      %p148 = scmp.ne.s32.totalorder %s140, %s142
      %p149 = scmp.eq.s32.totalorder %s38, 1
      %p150 = por %p148, %p149
      %p151 = scmp.ne.s32.totalorder %s142, %s143
      %p152 = scmp.eq.s32.totalorder %s38, 0
      %p153 = por %p151, %p152
      %p154 = scmp.ne.s32.totalorder %s142, %s143
      %p155 = scmp.eq.s32.totalorder %s39, 1
      %p156 = por %p154, %p155
      %p158 = scmp.ne.s32.totalorder %s143, %s157
      %p159 = scmp.eq.s32.totalorder %s39, 0
      %p160 = por %p158, %p159
      %s162 = sadd.s32 %s161, 1
      %p165 = scmp.eq.s32.totalorder %s33, 1
      %p166 = scmp.ne.s32.totalorder %s161, %s163
      %p167 = scmp.eq.s32.totalorder %s33, 0
      %p168 = por %p166, %p167
      %p169 = scmp.ne.s32.totalorder %s161, %s163
      %p170 = scmp.eq.s32.totalorder %s38, 1
      %p171 = por %p169, %p170
      %p172 = scmp.ne.s32.totalorder %s163, %s164
      %p173 = scmp.eq.s32.totalorder %s38, 0
      %p174 = por %p172, %p173
      %p175 = scmp.ne.s32.totalorder %s163, %s164
      %p176 = scmp.eq.s32.totalorder %s39, 1
      %p177 = por %p175, %p176
      %p179 = scmp.ne.s32.totalorder %s164, %s178
      %p180 = scmp.eq.s32.totalorder %s39, 0
      %p181 = por %p179, %p180
      %s183 = sadd.s32 %s182, 1
      %p186 = scmp.eq.s32.totalorder %s33, 1
      %p187 = scmp.ne.s32.totalorder %s182, %s184
      %p188 = scmp.eq.s32.totalorder %s33, 0
      %p189 = por %p187, %p188
      %p190 = scmp.ne.s32.totalorder %s182, %s184
      %p191 = scmp.eq.s32.totalorder %s38, 1
      %p192 = por %p190, %p191
      %p193 = scmp.ne.s32.totalorder %s184, %s185
      %p194 = scmp.eq.s32.totalorder %s38, 0
      %p195 = por %p193, %p194
      %p196 = scmp.ne.s32.totalorder %s184, %s185
      %p197 = scmp.eq.s32.totalorder %s39, 1
      %p198 = por %p196, %p197
      %p200 = scmp.ne.s32.totalorder %s185, %s199
      %p201 = scmp.eq.s32.totalorder %s39, 0
      %p202 = por %p200, %p201
      %s204 = sadd.s32 %s203, 1
      %p207 = scmp.eq.s32.totalorder %s33, 1
      %p208 = scmp.ne.s32.totalorder %s203, %s205
      %p209 = scmp.eq.s32.totalorder %s33, 0
      %p210 = por %p208, %p209
      %p211 = scmp.ne.s32.totalorder %s203, %s205
      %p212 = scmp.eq.s32.totalorder %s38, 1
      %p213 = por %p211, %p212
      %p214 = scmp.ne.s32.totalorder %s205, %s206
      %p215 = scmp.eq.s32.totalorder %s38, 0
      %p216 = por %p214, %p215
      %p217 = scmp.ne.s32.totalorder %s205, %s206
      %p218 = scmp.eq.s32.totalorder %s39, 1
      %p219 = por %p217, %p218
      %p221 = scmp.ne.s32.totalorder %s206, %s220
      %p222 = scmp.eq.s32.totalorder %s39, 0
      %p223 = por %p221, %p222
      %s225 = sadd.s32 %s224, 1
      %p228 = scmp.eq.s32.totalorder %s33, 1
      %p229 = scmp.ne.s32.totalorder %s224, %s226
      %p230 = scmp.eq.s32.totalorder %s33, 0
      %p231 = por %p229, %p230
      %p232 = scmp.ne.s32.totalorder %s224, %s226
      %p233 = scmp.eq.s32.totalorder %s38, 1
      %p234 = por %p232, %p233
      %p235 = scmp.ne.s32.totalorder %s226, %s227
      %p236 = scmp.eq.s32.totalorder %s38, 0
      %p237 = por %p235, %p236
      %p238 = scmp.ne.s32.totalorder %s226, %s227
      %p239 = scmp.eq.s32.totalorder %s39, 1
      %p240 = por %p238, %p239
      %p242 = scmp.ne.s32.totalorder %s227, %s241
      %p243 = scmp.eq.s32.totalorder %s39, 0
      %p244 = por %p242, %p243
      %s246 = sadd.s32 %s245, 1
      %p249 = scmp.eq.s32.totalorder %s33, 1
      %p250 = scmp.ne.s32.totalorder %s245, %s247
      %p251 = scmp.eq.s32.totalorder %s33, 0
      %p252 = por %p250, %p251
      %p253 = scmp.ne.s32.totalorder %s245, %s247
      %p254 = scmp.eq.s32.totalorder %s38, 1
      %p255 = por %p253, %p254
      %p256 = scmp.ne.s32.totalorder %s247, %s248
      %p257 = scmp.eq.s32.totalorder %s38, 0
      %p258 = por %p256, %p257
      %p259 = scmp.ne.s32.totalorder %s247, %s248
      %p260 = scmp.eq.s32.totalorder %s39, 1
      %p261 = por %p259, %p260
      %p263 = scmp.ne.s32.totalorder %s248, %s262
      %p264 = scmp.eq.s32.totalorder %s39, 0
      %p265 = por %p263, %p264
      %s267 = sadd.s32 %s266, 1
      %p270 = scmp.eq.s32.totalorder %s33, 1
      %p271 = scmp.ne.s32.totalorder %s266, %s268
      %p272 = scmp.eq.s32.totalorder %s33, 0
      %p273 = por %p271, %p272
      %p274 = scmp.ne.s32.totalorder %s266, %s268
      %p275 = scmp.eq.s32.totalorder %s38, 1
      %p276 = por %p274, %p275
      %p277 = scmp.ne.s32.totalorder %s268, %s269
      %p278 = scmp.eq.s32.totalorder %s38, 0
      %p279 = por %p277, %p278
      %p280 = scmp.ne.s32.totalorder %s268, %s269
      %p281 = scmp.eq.s32.totalorder %s39, 1
      %p282 = por %p280, %p281
      %p284 = scmp.ne.s32.totalorder %s269, %s283
      %p285 = scmp.eq.s32.totalorder %s39, 0
      %p286 = por %p284, %p285
      %s288 = sadd.s32 %s287, 1
      %p291 = scmp.eq.s32.totalorder %s33, 1
      %p292 = scmp.ne.s32.totalorder %s287, %s289
      %p293 = scmp.eq.s32.totalorder %s33, 0
      %p294 = por %p292, %p293
      %p295 = scmp.ne.s32.totalorder %s287, %s289
      %p296 = scmp.eq.s32.totalorder %s38, 1
      %p297 = por %p295, %p296
      %p298 = scmp.ne.s32.totalorder %s289, %s290
      %p299 = scmp.eq.s32.totalorder %s38, 0
      %p300 = por %p298, %p299
      %p301 = scmp.ne.s32.totalorder %s289, %s290
      %p302 = scmp.eq.s32.totalorder %s39, 1
      %p303 = por %p301, %p302
      %p305 = scmp.ne.s32.totalorder %s290, %s304
      %p306 = scmp.eq.s32.totalorder %s39, 0
      %p307 = por %p305, %p306
      %s309 = sadd.s32 %s308, 1
      %p312 = scmp.eq.s32.totalorder %s33, 1
      %p313 = scmp.ne.s32.totalorder %s308, %s310
      %p314 = scmp.eq.s32.totalorder %s33, 0
      %p315 = por %p313, %p314
      %p316 = scmp.ne.s32.totalorder %s308, %s310
      %p317 = scmp.eq.s32.totalorder %s38, 1
      %p318 = por %p316, %p317
      %p319 = scmp.ne.s32.totalorder %s310, %s311
      %p320 = scmp.eq.s32.totalorder %s38, 0
      %p321 = por %p319, %p320
      %p322 = scmp.ne.s32.totalorder %s310, %s311
      %p323 = scmp.eq.s32.totalorder %s39, 1
      %p324 = por %p322, %p323
      %p326 = scmp.ne.s32.totalorder %s311, %s325
      %p327 = scmp.eq.s32.totalorder %s39, 0
      %p328 = por %p326, %p327
      %s330 = sadd.s32 %s329, 1
      %p333 = scmp.eq.s32.totalorder %s33, 1
      %p334 = scmp.ne.s32.totalorder %s329, %s331
      %p335 = scmp.eq.s32.totalorder %s33, 0
      %p336 = por %p334, %p335
      %p337 = scmp.ne.s32.totalorder %s329, %s331
      %p338 = scmp.eq.s32.totalorder %s38, 1
      %p339 = por %p337, %p338
      %p340 = scmp.ne.s32.totalorder %s331, %s332
      %p341 = scmp.eq.s32.totalorder %s38, 0
      %p342 = por %p340, %p341
      %p343 = scmp.ne.s32.totalorder %s331, %s332
      %p344 = scmp.eq.s32.totalorder %s39, 1
      %p345 = por %p343, %p344
      %p347 = scmp.ne.s32.totalorder %s332, %s346
      %p348 = scmp.eq.s32.totalorder %s39, 0
      %p349 = por %p347, %p348
      %s351 = sadd.s32 %s350, 1
      %p354 = scmp.eq.s32.totalorder %s33, 1
      %p355 = scmp.ne.s32.totalorder %s350, %s352
      %p356 = scmp.eq.s32.totalorder %s33, 0
      %p357 = por %p355, %p356
      %p358 = scmp.ne.s32.totalorder %s350, %s352
      %p359 = scmp.eq.s32.totalorder %s38, 1
      %p360 = por %p358, %p359
      %p361 = scmp.ne.s32.totalorder %s352, %s353
      %p362 = scmp.eq.s32.totalorder %s38, 0
      %p363 = por %p361, %p362
      %p364 = scmp.ne.s32.totalorder %s352, %s353
      %p365 = scmp.eq.s32.totalorder %s39, 1
      %p366 = por %p364, %p365
      %p368 = scmp.ne.s32.totalorder %s353, %s367
      %p369 = scmp.eq.s32.totalorder %s39, 0
      %p370 = por %p368, %p369
      %s372 = sadd.s32 %s371, 1
      %p375 = scmp.eq.s32.totalorder %s33, 1
      %p376 = scmp.ne.s32.totalorder %s371, %s373
      %p377 = scmp.eq.s32.totalorder %s33, 0
      %p378 = por %p376, %p377
      %p379 = scmp.ne.s32.totalorder %s371, %s373
      %p380 = scmp.eq.s32.totalorder %s38, 1
      %p381 = por %p379, %p380
      %p382 = scmp.ne.s32.totalorder %s373, %s374
      %p383 = scmp.eq.s32.totalorder %s38, 0
      %p384 = por %p382, %p383
      %p385 = scmp.ne.s32.totalorder %s373, %s374
      %p386 = scmp.eq.s32.totalorder %s39, 1
      %p387 = por %p385, %p386
      %p389 = scmp.ne.s32.totalorder %s374, %s388
      %p390 = scmp.eq.s32.totalorder %s39, 0
      %p391 = por %p389, %p390
      %s393 = sadd.s32 %s392, 1
      %p396 = scmp.eq.s32.totalorder %s33, 1
      %p397 = scmp.ne.s32.totalorder %s392, %s394
      %p398 = scmp.eq.s32.totalorder %s33, 0
      %p399 = por %p397, %p398
      %p400 = scmp.ne.s32.totalorder %s392, %s394
      %p401 = scmp.eq.s32.totalorder %s38, 1
      %p402 = por %p400, %p401
      %p403 = scmp.ne.s32.totalorder %s394, %s395
      %p404 = scmp.eq.s32.totalorder %s38, 0
      %p405 = por %p403, %p404
      %p406 = scmp.ne.s32.totalorder %s394, %s395
      %p407 = scmp.eq.s32.totalorder %s39, 1
      %p408 = por %p406, %p407
      %p410 = scmp.ne.s32.totalorder %s395, %s409
      %p411 = scmp.eq.s32.totalorder %s39, 0
      %p412 = por %p410, %p411
      %s413 = ssub.s32 %s33, %s40
      %p414 = scmp.eq.s32.totalorder %s413, 0
      %s416 = sadd.s32 %s415, 1
      %s417 = scalar_select %p414, %s415, %s416
      %p420 = pneg %p414
      %p421 = scmp.eq.s32.totalorder %s33, 1
      %p422 = por %p420, %p421
      %p423 = scmp.ne.s32.totalorder %s415, %s418
      %p424 = scmp.eq.s32.totalorder %s33, 0
      %p425 = por %p423, %p424
      %p426 = scmp.ne.s32.totalorder %s415, %s418
      %p427 = scmp.eq.s32.totalorder %s38, 1
      %p428 = por %p426, %p427
      %p429 = scmp.ne.s32.totalorder %s418, %s419
      %p430 = scmp.eq.s32.totalorder %s38, 0
      %p431 = por %p429, %p430
      %p432 = scmp.ne.s32.totalorder %s418, %s419
      %p433 = scmp.eq.s32.totalorder %s39, 1
      %p434 = por %p432, %p433
      %p436 = scmp.ne.s32.totalorder %s419, %s435
      %p437 = scmp.eq.s32.totalorder %s39, 0
      %p438 = por %p436, %p437
      %p439 = scmp.le.s32.totalorder 1, %s33
      %p440 = scmp.lt.s32.totalorder %s33, 3
      %p441 = pnand %p439, %p440
      %p442 = pneg %p441
      // Predicated region
      $region9: #{tpu_custom_call.1} parent=5 // pred_check
        _
      $region10: #{tpu_custom_call.1} parent=5 // pred_check_branch
        %444 = sbr.rel (%p441) target = $region12
      $region11: #{tpu_custom_call.1} parent=5 // pred_region
        %s445 = ssub.s32 %s33, 1
        // Predicated region
        $region13: #{tpu_custom_call.1} parent=11 // pred_check
          %p446 = pneg %p132
        $region14: #{tpu_custom_call.1} parent=11 // pred_check_branch
          %448 = sbr.rel (%p446) target = $region16
        $region15: #{tpu_custom_call.1} parent=11 // pred_region
          _
        $region16: #{tpu_custom_call.1} parent=11 // pred_fallthru
          _
        // Predicated region
        $region17: #{tpu_custom_call.1} parent=11 // pred_check
          %p449 = pneg %p153
        $region18: #{tpu_custom_call.1} parent=11 // pred_check_branch
          %451 = sbr.rel (%p449) target = $region20
        $region19: #{tpu_custom_call.1} parent=11 // pred_region
          _
        $region20: #{tpu_custom_call.1} parent=11 // pred_fallthru
          _
        // Predicated region
        $region21: #{tpu_custom_call.1} parent=11 // pred_check
          %p452 = pneg %p174
        $region22: #{tpu_custom_call.1} parent=11 // pred_check_branch
          %454 = sbr.rel (%p452) target = $region24
        $region23: #{tpu_custom_call.1} parent=11 // pred_region
          _
        $region24: #{tpu_custom_call.1} parent=11 // pred_fallthru
          _
        // Predicated region
        $region25: #{tpu_custom_call.1} parent=11 // pred_check
          %p455 = pneg %p195
        $region26: #{tpu_custom_call.1} parent=11 // pred_check_branch
          %457 = sbr.rel (%p455) target = $region28
        $region27: #{tpu_custom_call.1} parent=11 // pred_region
          _
        $region28: #{tpu_custom_call.1} parent=11 // pred_fallthru
          _
        // Predicated region
        $region29: #{tpu_custom_call.1} parent=11 // pred_check
          %p458 = pneg %p216
        $region30: #{tpu_custom_call.1} parent=11 // pred_check_branch
          %460 = sbr.rel (%p458) target = $region32
        $region31: #{tpu_custom_call.1} parent=11 // pred_region
          _
        $region32: #{tpu_custom_call.1} parent=11 // pred_fallthru
          _
        // Predicated region
        $region33: #{tpu_custom_call.1} parent=11 // pred_check
          %p461 = pneg %p237
        $region34: #{tpu_custom_call.1} parent=11 // pred_check_branch
          %463 = sbr.rel (%p461) target = $region36
        $region35: #{tpu_custom_call.1} parent=11 // pred_region
          _
        $region36: #{tpu_custom_call.1} parent=11 // pred_fallthru
          _
        // Predicated region
        $region37: #{tpu_custom_call.1} parent=11 // pred_check
          %p464 = pneg %p258
        $region38: #{tpu_custom_call.1} parent=11 // pred_check_branch
          %466 = sbr.rel (%p464) target = $region40
        $region39: #{tpu_custom_call.1} parent=11 // pred_region
          %s468 = ssub.s32 512, 512
          %469 = vsyncadd [#allocation6], %s468
          %s470 = sshll.u32 [#allocation7], 4
          %s471 = int_to_ptr.vmem [resolvable:$true] %s470
          %476 = dma.hbm_to_vmem [thread:$0]  %s9, 512, %s471, [#allocation6], 128, 128, 8
        $region40: #{tpu_custom_call.1} parent=11 // pred_fallthru
          _
        // Predicated region
        $region41: #{tpu_custom_call.1} parent=11 // pred_check
          %p477 = pneg %p279
        $region42: #{tpu_custom_call.1} parent=11 // pred_check_branch
          %479 = sbr.rel (%p477) target = $region44
        $region43: #{tpu_custom_call.1} parent=11 // pred_region
          _
        $region44: #{tpu_custom_call.1} parent=11 // pred_fallthru
          _
        // Predicated region
        $region45: #{tpu_custom_call.1} parent=11 // pred_check
          %p480 = pneg %p300
        $region46: #{tpu_custom_call.1} parent=11 // pred_check_branch
          %482 = sbr.rel (%p480) target = $region48
        $region47: #{tpu_custom_call.1} parent=11 // pred_region
          %s484 = ssub.s32 512, 512
          %485 = vsyncadd [#allocation9], %s484
          %s486 = sshll.u32 [#allocation8], 4
          %s487 = int_to_ptr.vmem [resolvable:$true] %s486
          %492 = dma.hbm_to_vmem [thread:$0]  %s11, 512, %s487, [#allocation9], 128, 128, 8
        $region48: #{tpu_custom_call.1} parent=11 // pred_fallthru
          _
        // Predicated region
        $region49: #{tpu_custom_call.1} parent=11 // pred_check
          %p493 = pneg %p321
        $region50: #{tpu_custom_call.1} parent=11 // pred_check_branch
          %495 = sbr.rel (%p493) target = $region52
        $region51: #{tpu_custom_call.1} parent=11 // pred_region
          _
        $region52: #{tpu_custom_call.1} parent=11 // pred_fallthru
          _
        // Predicated region
        $region53: #{tpu_custom_call.1} parent=11 // pred_check
          %p496 = pneg %p342
        $region54: #{tpu_custom_call.1} parent=11 // pred_check_branch
          %498 = sbr.rel (%p496) target = $region56
        $region55: #{tpu_custom_call.1} parent=11 // pred_region
          _
        $region56: #{tpu_custom_call.1} parent=11 // pred_fallthru
          _
        // Predicated region
        $region57: #{tpu_custom_call.1} parent=11 // pred_check
          %p499 = pneg %p363
        $region58: #{tpu_custom_call.1} parent=11 // pred_check_branch
          %501 = sbr.rel (%p499) target = $region60
        $region59: #{tpu_custom_call.1} parent=11 // pred_region
          _
        $region60: #{tpu_custom_call.1} parent=11 // pred_fallthru
          _
        // Predicated region
        $region61: #{tpu_custom_call.1} parent=11 // pred_check
          %p502 = pneg %p384
        $region62: #{tpu_custom_call.1} parent=11 // pred_check_branch
          %504 = sbr.rel (%p502) target = $region64
        $region63: #{tpu_custom_call.1} parent=11 // pred_region
          _
        $region64: #{tpu_custom_call.1} parent=11 // pred_fallthru
          _
        // Predicated region
        $region65: #{tpu_custom_call.1} parent=11 // pred_check
          %p505 = pneg %p405
        $region66: #{tpu_custom_call.1} parent=11 // pred_check_branch
          %507 = sbr.rel (%p505) target = $region68
        $region67: #{tpu_custom_call.1} parent=11 // pred_region
          _
        $region68: #{tpu_custom_call.1} parent=11 // pred_fallthru
          _
      $region12: #{tpu_custom_call.1} parent=5 // pred_fallthru
        _
      %p508 = scmp.lt.s32.totalorder %s33, 2
      // Predicated region
      $region69: #{tpu_custom_call.1} parent=5 // pred_check
        %p509 = pneg %p508
      $region70: #{tpu_custom_call.1} parent=5 // pred_check_branch
        %511 = sbr.rel (%p509) target = $region72
      $region71: #{tpu_custom_call.1} parent=5 // pred_region
        // Predicated region
        $region73: #{tpu_custom_call.1} parent=71 // pred_check
          %p512 = pneg %p53
        $region74: #{tpu_custom_call.1} parent=71 // pred_check_branch
          %514 = sbr.rel (%p512) target = $region76
        $region75: #{tpu_custom_call.1} parent=71 // pred_region
          %s515 = sand.u32 %s43, 1
          %s516 = scalar_lea.sflag [#allocation3], %s515
          %s517 = sand.u32 %s43, 1
          %s518 = smul.addr %s517, 8
          %s519 = scalar_lea.vmem [#allocation2], %s518
          %s521 = ssub.s32 128, 128
          %522 = vsyncadd %s516, %s521
          %s523 = smul.addr %s33, 128
          %s524 = scalar_lea.hbm %s0, %s523
          %s526 = sshll.u32 %s519, 4
          %s527 = int_to_ptr.vmem [resolvable:$true] %s526
          %529 = dma.hbm_to_vmem [thread:$0]  %s524, 128, %s527, %s516
        $region76: #{tpu_custom_call.1} parent=71 // pred_fallthru
          _
        // Predicated region
        $region77: #{tpu_custom_call.1} parent=71 // pred_check
          %p530 = pneg %p79
        $region78: #{tpu_custom_call.1} parent=71 // pred_check_branch
          %532 = sbr.rel (%p530) target = $region80
        $region79: #{tpu_custom_call.1} parent=71 // pred_region
          %s533 = sand.u32 %s33, 1
          %s534 = scalar_lea.sflag [#allocation6], %s533
          %s535 = sand.u32 %s69, 1
          %s536 = smul.addr %s535, 8
          %s537 = scalar_lea.vmem [#allocation5], %s536
          %s539 = ssub.s32 128, 128
          %540 = vsyncadd %s534, %s539
          %s541 = smul.addr %s33, 128
          %s542 = scalar_lea.hbm %s1, %s541
          %s544 = sshll.u32 %s537, 4
          %s545 = int_to_ptr.vmem [resolvable:$true] %s544
          %547 = dma.hbm_to_vmem [thread:$0]  %s542, 128, %s545, %s534
        $region80: #{tpu_custom_call.1} parent=71 // pred_fallthru
          _
        // Predicated region
        $region81: #{tpu_custom_call.1} parent=71 // pred_check
          %p548 = pneg %p105
        $region82: #{tpu_custom_call.1} parent=71 // pred_check_branch
          %550 = sbr.rel (%p548) target = $region84
        $region83: #{tpu_custom_call.1} parent=71 // pred_region
          %p551 = scmp.lt.s32.totalorder %s33, 1
          %s552 = scalar_select %p551, %s33, 1
          %s553 = scalar_lea.vmem %s2, %s552
        $region84: #{tpu_custom_call.1} parent=71 // pred_fallthru
          _
      $region72: #{tpu_custom_call.1} parent=5 // pred_fallthru
        _
      %p554 = scmp.le.s32.totalorder 1, %s33
      %p555 = scmp.lt.s32.totalorder %s33, 3
      %p556 = pnand %p554, %p555
      %p557 = pneg %p556
      // Predicated region
      $region85: #{tpu_custom_call.1} parent=5 // pred_check
        _
      $region86: #{tpu_custom_call.1} parent=5 // pred_check_branch
        %559 = sbr.rel (%p556) target = $region88
      $region87: #{tpu_custom_call.1} parent=5 // pred_region
        %s560 = ssub.s32 %s33, 1
        %s561 = sand.u32 %s46, 1
        %s562 = scalar_lea.sflag [#allocation3], %s561
        %s563 = sand.u32 %s46, 1
        %s564 = smul.addr %s563, 8
        %s565 = scalar_lea.vmem [#allocation2], %s564
        // Predicated region
        $region89: #{tpu_custom_call.1} parent=87 // pred_check
          %p566 = pneg %p59
        $region90: #{tpu_custom_call.1} parent=87 // pred_check_branch
          %568 = sbr.rel (%p566) target = $region92
        $region91: #{tpu_custom_call.1} parent=87 // pred_region
          %569 = dma.done %s562, 128
        $region92: #{tpu_custom_call.1} parent=87 // pred_fallthru
          _
        %s570 = sand.u32 %s38, 1
        %s571 = scalar_lea.sflag [#allocation6], %s570
        %s572 = sand.u32 %s72, 1
        %s573 = smul.addr %s572, 8
        %s574 = scalar_lea.vmem [#allocation5], %s573
        // Predicated region
        $region93: #{tpu_custom_call.1} parent=87 // pred_check
          %p575 = pneg %p85
        $region94: #{tpu_custom_call.1} parent=87 // pred_check_branch
          %577 = sbr.rel (%p575) target = $region96
        $region95: #{tpu_custom_call.1} parent=87 // pred_region
          %578 = dma.done %s571, 128
        $region96: #{tpu_custom_call.1} parent=87 // pred_fallthru
          _
        // Predicated region
        $region97: #{tpu_custom_call.1} parent=87 // pred_check
          %p579 = pneg %p258
        $region98: #{tpu_custom_call.1} parent=87 // pred_check_branch
          %581 = sbr.rel (%p579) target = $region100
        $region99: #{tpu_custom_call.1} parent=87 // pred_region
          %582 = dma.done [#allocation6], 512
        $region100: #{tpu_custom_call.1} parent=87 // pred_fallthru
          _
        // Predicated region
        $region101: #{tpu_custom_call.1} parent=87 // pred_check
          %p583 = pneg %p300
        $region102: #{tpu_custom_call.1} parent=87 // pred_check_branch
          %585 = sbr.rel (%p583) target = $region104
        $region103: #{tpu_custom_call.1} parent=87 // pred_region
          %586 = dma.done [#allocation9], 512
        $region104: #{tpu_custom_call.1} parent=87 // pred_fallthru
          _
        %s587 = sand.u32 %s46, 1
        %s588 = scalar_lea.sflag [#allocation3], %s587
        %s589 = sand.u32 %s46, 1
        %s590 = smul.addr %s589, 8
        %s591 = scalar_lea.vmem [#allocation2], %s590
        %p592 = pneg %p59
        %p593 = pneg %p56
        %s594 = sand.u32 %s38, 1
        %s595 = scalar_lea.sflag [#allocation6], %s594
        %s596 = sand.u32 %s72, 1
        %s597 = smul.addr %s596, 8
        %s598 = scalar_lea.vmem [#allocation5], %s597
        %p599 = pneg %p85
        %p600 = pneg %p82
        %p601 = scmp.lt.s32.totalorder %s38, 1
        %s602 = scalar_select %p601, %s38, 1
        %s603 = scalar_lea.vmem %s2, %s602
        %p604 = pneg %p111
        %p605 = pneg %p108
        %p606 = pneg %p132
        %p607 = pneg %p129
        %p608 = pneg %p153
        %p609 = pneg %p150
        %p610 = pneg %p174
        %p611 = pneg %p171
        %p612 = pneg %p195
        %p613 = pneg %p192
        %p614 = pneg %p216
        %p615 = pneg %p213
        %p616 = pneg %p237
        %p617 = pneg %p234
        %p618 = pneg %p258
        %p619 = pneg %p255
        %p620 = pneg %p279
        %p621 = pneg %p276
        %p622 = pneg %p300
        %p623 = pneg %p297
        %p624 = pneg %p321
        %p625 = pneg %p318
        %p626 = pneg %p342
        %p627 = pneg %p339
        %p628 = pneg %p363
        %p629 = pneg %p360
        %p630 = pneg %p384
        %p631 = pneg %p381
        %p632 = pneg %p405
        %p633 = pneg %p402
        %p634 = pneg %p431
        %p635 = pneg %p428
        %s636 = sand.u32 %s418, 1
        %s637 = scalar_lea.sflag [#allocation4], %s636
        %s638 = sand.u32 %s418, 1
        %s639 = smul.addr %s638, 8
        %s640 = scalar_lea.vmem [#allocation10], %s639
        %p641 = scmp.lt.s32.totalorder %s38, 1
        %s642 = scalar_select %p641, %s38, 1
        %s643 = scalar_lea.vmem %s2, %s642
        %v644 = vld [vmem:[%s565] sm:$0xff]
        %v645 = vld [vmem:[%s574] sm:$0xff]
        %v646 = vld [vmem:[%s643] sm:$0x1]
        %v647 = vld [vmem:[%s3] sm:$0xff]
        %v648 = vld [vmem:[%s3 + $0x8] sm:$0xff]
        %v649 = vld [vmem:[%s3 + $0x10] sm:$0xff]
        %v650 = vld [vmem:[%s3 + $0x18] sm:$0xff]
        %v651 = vld [vmem:[%s4] sm:$0x1]
        %v653 = vlaneseq
        %v654 = vshrl.u32 %v653, 7
        %v655 = vsub.s32 0, %v654
        %v656 = vrot.slane %v651, %v655
        %vm658 = vcmask 261120
        %v660 = vsel %vm658, %v644, 0
        %662 = vmatprep.subr.mxu0 0.0
        %663 = vmatpush1.msra.mxu0 %v647
        %664 = vmatprep.subr.mxu0 0.0
        %665 = vmatpush1.msra.mxu0 %v648
        %666 = vmatprep.subr.mxu0 0.0
        %667 = vmatpush1.msra.mxu0 %v649
        %668 = vmatprep.subr.mxu0 0.0
        %669 = vmatpush1.msra.mxu0 %v650
        %670 = vmatprep.subr.mxu0 0.0
        %671 = vmatpush1.msra.mxu0 0.0
        %672 = vmatprep.subr.mxu0 0.0
        %673 = vmatpush1.msra.mxu0 0.0
        %674 = vmatprep.subr.mxu0 0.0
        %675 = vmatpush1.msra.mxu0 0.0
        %676 = vmatprep.subr.mxu0 0.0
        %677 = vmatpush1.msra.mxu0 0.0
        %678 = vmatprep.subr.mxu0 0.0
        %679 = vmatpush1.msra.mxu0 0.0
        %680 = vmatprep.subr.mxu0 0.0
        %681 = vmatpush1.msra.mxu0 0.0
        %682 = vmatprep.subr.mxu0 0.0
        %683 = vmatpush1.msra.mxu0 0.0
        %684 = vmatprep.subr.mxu0 0.0
        %685 = vmatpush1.msra.mxu0 0.0
        %686 = vmatprep.subr.mxu0 0.0
        %687 = vmatpush1.msra.mxu0 0.0
        %688 = vmatprep.subr.mxu0 0.0
        %689 = vmatpush1.msra.mxu0 0.0
        %690 = vmatprep.subr.mxu0 0.0
        %691 = vmatpush1.msra.mxu0 0.0
        %692 = vmatprep.subr.mxu0 0.0
        %693 = vmatpush1.msra.mxu0 0.0
        %694 = vmatprep.subr.mxu0 0.0
        %695 = vmatpush1.msra.mxu0 0.0
        %696 = vmatprep.subr.mxu0 0.0
        %697 = vmatpush1.msra.mxu0 0.0
        %698 = vmatprep.subr.mxu0 0.0
        %699 = vmatpush1.msra.mxu0 0.0
        %700 = vmatprep.subr.mxu0 0.0
        %701 = vmatpush1.msra.mxu0 0.0
        %702 = vmatprep.subr.mxu0 0.0
        %703 = vmatpush1.msra.mxu0 0.0
        %704 = vmatprep.subr.mxu0 0.0
        %705 = vmatpush1.msra.mxu0 0.0
        %706 = vmatprep.subr.mxu0 0.0
        %707 = vmatpush1.msra.mxu0 0.0
        %708 = vmatprep.subr.mxu0 0.0
        %709 = vmatpush1.msra.mxu0 0.0
        %710 = vmatprep.subr.mxu0 0.0
        %711 = vmatpush1.msra.mxu0 0.0
        %712 = vmatprep.subr.mxu0 0.0
        %713 = vmatpush1.msra.mxu0 0.0
        %714 = vmatprep.subr.mxu0 0.0
        %715 = vmatpush1.msra.mxu0 0.0
        %716 = vmatprep.subr.mxu0 0.0
        %717 = vmatpush1.msra.mxu0 0.0
        %718 = vmatprep.subr.mxu0 0.0
        %719 = vmatpush1.msra.mxu0 0.0
        %720 = vmatprep.subr.mxu0 0.0
        %721 = vmatpush1.msra.mxu0 0.0
        %722 = vmatprep.subr.mxu0 0.0
        %723 = vmatpush1.msra.mxu0 0.0
        %724 = vmatprep.subr.mxu0 0.0
        %725 = vmatpush1.msra.mxu0 0.0
        %726 = vmatprep.mubr.f32.mxu0 0.0
        %727 = vmatmul.mubr.f32.gmra.mrb[0].mxu0 %v660
        %v728 = vpop.f32.mrb[0].mxu0
        %v729 = vadd.f32 %v656, %v728
        %v730 = vpop.f32.mrb[0].mxu0
        %731 = vdwg.mxu0
        %v732 = vld [vmem:[%s5] sm:$0xff]
        %v733 = vld [vmem:[%s5 + $0x8] sm:$0xff]
        %v734 = vld [vmem:[%s5 + $0x10] sm:$0xff]
        %v735 = vld [vmem:[%s5 + $0x18] sm:$0xff]
        %v736 = vld [vmem:[%s6] sm:$0x1]
        %v738 = vlaneseq
        %v739 = vshrl.u32 %v738, 7
        %v740 = vsub.s32 0, %v739
        %v741 = vrot.slane %v736, %v740
        %v744 = vsel %vm658, %v645, 0
        %746 = vmatprep.subr.mxu0 0.0
        %747 = vmatpush1.msra.mxu0 %v732
        %748 = vmatprep.subr.mxu0 0.0
        %749 = vmatpush1.msra.mxu0 %v733
        %750 = vmatprep.subr.mxu0 0.0
        %751 = vmatpush1.msra.mxu0 %v734
        %752 = vmatprep.subr.mxu0 0.0
        %753 = vmatpush1.msra.mxu0 %v735
        %754 = vmatprep.subr.mxu0 0.0
        %755 = vmatpush1.msra.mxu0 0.0
        %756 = vmatprep.subr.mxu0 0.0
        %757 = vmatpush1.msra.mxu0 0.0
        %758 = vmatprep.subr.mxu0 0.0
        %759 = vmatpush1.msra.mxu0 0.0
        %760 = vmatprep.subr.mxu0 0.0
        %761 = vmatpush1.msra.mxu0 0.0
        %762 = vmatprep.subr.mxu0 0.0
        %763 = vmatpush1.msra.mxu0 0.0
        %764 = vmatprep.subr.mxu0 0.0
        %765 = vmatpush1.msra.mxu0 0.0
        %766 = vmatprep.subr.mxu0 0.0
        %767 = vmatpush1.msra.mxu0 0.0
        %768 = vmatprep.subr.mxu0 0.0
        %769 = vmatpush1.msra.mxu0 0.0
        %770 = vmatprep.subr.mxu0 0.0
        %771 = vmatpush1.msra.mxu0 0.0
        %772 = vmatprep.subr.mxu0 0.0
        %773 = vmatpush1.msra.mxu0 0.0
        %774 = vmatprep.subr.mxu0 0.0
        %775 = vmatpush1.msra.mxu0 0.0
        %776 = vmatprep.subr.mxu0 0.0
        %777 = vmatpush1.msra.mxu0 0.0
        %778 = vmatprep.subr.mxu0 0.0
        %779 = vmatpush1.msra.mxu0 0.0
        %780 = vmatprep.subr.mxu0 0.0
        %781 = vmatpush1.msra.mxu0 0.0
        %782 = vmatprep.subr.mxu0 0.0
        %783 = vmatpush1.msra.mxu0 0.0
        %784 = vmatprep.subr.mxu0 0.0
        %785 = vmatpush1.msra.mxu0 0.0
        %786 = vmatprep.subr.mxu0 0.0
        %787 = vmatpush1.msra.mxu0 0.0
        %788 = vmatprep.subr.mxu0 0.0
        %789 = vmatpush1.msra.mxu0 0.0
        %790 = vmatprep.subr.mxu0 0.0
        %791 = vmatpush1.msra.mxu0 0.0
        %792 = vmatprep.subr.mxu0 0.0
        %793 = vmatpush1.msra.mxu0 0.0
        %794 = vmatprep.subr.mxu0 0.0
        %795 = vmatpush1.msra.mxu0 0.0
        %796 = vmatprep.subr.mxu0 0.0
        %797 = vmatpush1.msra.mxu0 0.0
        %798 = vmatprep.subr.mxu0 0.0
        %799 = vmatpush1.msra.mxu0 0.0
        %800 = vmatprep.subr.mxu0 0.0
        %801 = vmatpush1.msra.mxu0 0.0
        %802 = vmatprep.subr.mxu0 0.0
        %803 = vmatpush1.msra.mxu0 0.0
        %804 = vmatprep.subr.mxu0 0.0
        %805 = vmatpush1.msra.mxu0 0.0
        %806 = vmatprep.subr.mxu0 0.0
        %807 = vmatpush1.msra.mxu0 0.0
        %808 = vmatprep.subr.mxu0 0.0
        %809 = vmatpush1.msra.mxu0 0.0
        %810 = vmatprep.mubr.f32.mxu0 0.0
        %811 = vmatmul.mubr.f32.gmra.mrb[0].mxu0 %v744
        %v812 = vpop.f32.mrb[0].mxu0
        %v813 = vadd.f32 %v741, %v812
        %v814 = vpop.f32.mrb[0].mxu0
        %815 = vdwg.mxu0
        %v816 = vld [vmem:[%s7] sm:$0xff]
        %v817 = vld [vmem:[%s7 + $0x8] sm:$0xff]
        %v818 = vld [vmem:[%s7 + $0x10] sm:$0xff]
        %v819 = vld [vmem:[%s7 + $0x18] sm:$0xff]
        %v820 = vld [vmem:[%s8] sm:$0x1]
        %v822 = vlaneseq
        %v823 = vshrl.u32 %v822, 7
        %v824 = vsub.s32 0, %v823
        %v825 = vrot.slane %v820, %v824
        %827 = vmatprep.subr.mxu0 0.0
        %828 = vmatpush1.msra.mxu0 %v816
        %829 = vmatprep.subr.mxu0 0.0
        %830 = vmatpush1.msra.mxu0 %v817
        %831 = vmatprep.subr.mxu0 0.0
        %832 = vmatpush1.msra.mxu0 %v818
        %833 = vmatprep.subr.mxu0 0.0
        %834 = vmatpush1.msra.mxu0 %v819
        %835 = vmatprep.subr.mxu0 0.0
        %836 = vmatpush1.msra.mxu0 0.0
        %837 = vmatprep.subr.mxu0 0.0
        %838 = vmatpush1.msra.mxu0 0.0
        %839 = vmatprep.subr.mxu0 0.0
        %840 = vmatpush1.msra.mxu0 0.0
        %841 = vmatprep.subr.mxu0 0.0
        %842 = vmatpush1.msra.mxu0 0.0
        %843 = vmatprep.subr.mxu0 0.0
        %844 = vmatpush1.msra.mxu0 0.0
        %845 = vmatprep.subr.mxu0 0.0
        %846 = vmatpush1.msra.mxu0 0.0
        %847 = vmatprep.subr.mxu0 0.0
        %848 = vmatpush1.msra.mxu0 0.0
        %849 = vmatprep.subr.mxu0 0.0
        %850 = vmatpush1.msra.mxu0 0.0
        %851 = vmatprep.subr.mxu0 0.0
        %852 = vmatpush1.msra.mxu0 0.0
        %853 = vmatprep.subr.mxu0 0.0
        %854 = vmatpush1.msra.mxu0 0.0
        %855 = vmatprep.subr.mxu0 0.0
        %856 = vmatpush1.msra.mxu0 0.0
        %857 = vmatprep.subr.mxu0 0.0
        %858 = vmatpush1.msra.mxu0 0.0
        %859 = vmatprep.subr.mxu0 0.0
        %860 = vmatpush1.msra.mxu0 0.0
        %861 = vmatprep.subr.mxu0 0.0
        %862 = vmatpush1.msra.mxu0 0.0
        %863 = vmatprep.subr.mxu0 0.0
        %864 = vmatpush1.msra.mxu0 0.0
        %865 = vmatprep.subr.mxu0 0.0
        %866 = vmatpush1.msra.mxu0 0.0
        %867 = vmatprep.subr.mxu0 0.0
        %868 = vmatpush1.msra.mxu0 0.0
        %869 = vmatprep.subr.mxu0 0.0
        %870 = vmatpush1.msra.mxu0 0.0
        %871 = vmatprep.subr.mxu0 0.0
        %872 = vmatpush1.msra.mxu0 0.0
        %873 = vmatprep.subr.mxu0 0.0
        %874 = vmatpush1.msra.mxu0 0.0
        %875 = vmatprep.subr.mxu0 0.0
        %876 = vmatpush1.msra.mxu0 0.0
        %877 = vmatprep.subr.mxu0 0.0
        %878 = vmatpush1.msra.mxu0 0.0
        %879 = vmatprep.subr.mxu0 0.0
        %880 = vmatpush1.msra.mxu0 0.0
        %881 = vmatprep.subr.mxu0 0.0
        %882 = vmatpush1.msra.mxu0 0.0
        %883 = vmatprep.subr.mxu0 0.0
        %884 = vmatpush1.msra.mxu0 0.0
        %885 = vmatprep.subr.mxu0 0.0
        %886 = vmatpush1.msra.mxu0 0.0
        %887 = vmatprep.subr.mxu0 0.0
        %888 = vmatpush1.msra.mxu0 0.0
        %889 = vmatprep.subr.mxu0 0.0
        %890 = vmatpush1.msra.mxu0 0.0
        %891 = vmatprep.mubr.f32.mxu0 0.0
        %892 = vmatmul.mubr.f32.gmra.mrb[0].mxu0 %v744
        %v893 = vpop.f32.mrb[0].mxu0
        %v894 = vadd.f32 %v825, %v893
        %v895 = vpop.f32.mrb[0].mxu0
        %896 = vdwg.mxu0
        %v897 = vmul.f32 %v729, 0.35355338
        %899 = vrot.lane.b32.xlu0 %v897, 120
        %v900 = vpop.permute.xlu0 %899
        %901 = vrot.lane.b32.xlu0 %v897, 112
        %v902 = vpop.permute.xlu0 %901
        %903 = vrot.lane.b32.xlu0 %v897, 104
        %v904 = vpop.permute.xlu0 %903
        %906 = vrot.lane.b32.xlu0 %v813, 120
        %v907 = vpop.permute.xlu0 %906
        %909 = vrot.lane.b32.xlu0 %v813, 112
        %v910 = vpop.permute.xlu0 %909
        %912 = vrot.lane.b32.xlu0 %v813, 104
        %v913 = vpop.permute.xlu0 %912
        %916 = vrot.lane.b32.xlu0 %v894, 120
        %v917 = vpop.permute.xlu0 %916
        %919 = vrot.lane.b32.xlu0 %v894, 112
        %v920 = vpop.permute.xlu0 %919
        %922 = vrot.lane.b32.xlu0 %v894, 104
        %v923 = vpop.permute.xlu0 %922
        %v926 = vlaneseq
        %v927 = vshrl.u32 %v926, 7
        %v928 = vsub.s32 0, %v927
        %v929 = vrot.slane %v646, %v928
        %931 = vxpose.xlu0.b32.start [1/16] %v813, 128
        %932 = vxpose.xlu0.b32.cont [2/16] 0.0, 128
        %933 = vxpose.xlu0.b32.cont [3/16] 0.0, 128
        %934 = vxpose.xlu0.b32.cont [4/16] 0.0, 128
        %935 = vxpose.xlu0.b32.cont [5/16] 0.0, 128
        %936 = vxpose.xlu0.b32.cont [6/16] 0.0, 128
        %937 = vxpose.xlu0.b32.cont [7/16] 0.0, 128
        %938 = vxpose.xlu0.b32.cont [8/16] 0.0, 128
        %939 = vxpose.xlu0.b32.cont [9/16] 0.0, 128
        %940 = vxpose.xlu0.b32.cont [10/16] 0.0, 128
        %941 = vxpose.xlu0.b32.cont [11/16] 0.0, 128
        %942 = vxpose.xlu0.b32.cont [12/16] 0.0, 128
        %943 = vxpose.xlu0.b32.cont [13/16] 0.0, 128
        %944 = vxpose.xlu0.b32.cont [14/16] 0.0, 128
        %945 = vxpose.xlu0.b32.cont [15/16] 0.0, 128
        %946 = vxpose.xlu0.b32.end [16/16] 0.0, 128
        %v947 = vpop.trf.xlu0
        %v948 = vpop.trf.xlu0
        %v949 = vpop.trf.xlu0
        %v950 = vpop.trf.xlu0
        %v951 = vpop.trf.xlu0
        %v952 = vpop.trf.xlu0
        %v953 = vpop.trf.xlu0
        %v954 = vpop.trf.xlu0
        %v955 = vpop.trf.xlu0
        %v956 = vpop.trf.xlu0
        %v957 = vpop.trf.xlu0
        %v958 = vpop.trf.xlu0
        %v959 = vpop.trf.xlu0
        %v960 = vpop.trf.xlu0
        %v961 = vpop.trf.xlu0
        %v962 = vpop.trf.xlu0
        %963 = vxpose.xlu0.b32.start [1/16] %v907, 128
        %964 = vxpose.xlu0.b32.cont [2/16] 0.0, 128
        %965 = vxpose.xlu0.b32.cont [3/16] 0.0, 128
        %966 = vxpose.xlu0.b32.cont [4/16] 0.0, 128
        %967 = vxpose.xlu0.b32.cont [5/16] 0.0, 128
        %968 = vxpose.xlu0.b32.cont [6/16] 0.0, 128
        %969 = vxpose.xlu0.b32.cont [7/16] 0.0, 128
        %970 = vxpose.xlu0.b32.cont [8/16] 0.0, 128
        %971 = vxpose.xlu0.b32.cont [9/16] 0.0, 128
        %972 = vxpose.xlu0.b32.cont [10/16] 0.0, 128
        %973 = vxpose.xlu0.b32.cont [11/16] 0.0, 128
        %974 = vxpose.xlu0.b32.cont [12/16] 0.0, 128
        %975 = vxpose.xlu0.b32.cont [13/16] 0.0, 128
        %976 = vxpose.xlu0.b32.cont [14/16] 0.0, 128
        %977 = vxpose.xlu0.b32.cont [15/16] 0.0, 128
        %978 = vxpose.xlu0.b32.end [16/16] 0.0, 128
        %v979 = vpop.trf.xlu0
        %v980 = vpop.trf.xlu0
        %v981 = vpop.trf.xlu0
        %v982 = vpop.trf.xlu0
        %v983 = vpop.trf.xlu0
        %v984 = vpop.trf.xlu0
        %v985 = vpop.trf.xlu0
        %v986 = vpop.trf.xlu0
        %v987 = vpop.trf.xlu0
        %v988 = vpop.trf.xlu0
        %v989 = vpop.trf.xlu0
        %v990 = vpop.trf.xlu0
        %v991 = vpop.trf.xlu0
        %v992 = vpop.trf.xlu0
        %v993 = vpop.trf.xlu0
        %v994 = vpop.trf.xlu0
        %995 = vxpose.xlu0.b32.start [1/16] %v910, 128
        %996 = vxpose.xlu0.b32.cont [2/16] 0.0, 128
        %997 = vxpose.xlu0.b32.cont [3/16] 0.0, 128
        %998 = vxpose.xlu0.b32.cont [4/16] 0.0, 128
        %999 = vxpose.xlu0.b32.cont [5/16] 0.0, 128
        %1000 = vxpose.xlu0.b32.cont [6/16] 0.0, 128
        %1001 = vxpose.xlu0.b32.cont [7/16] 0.0, 128
        %1002 = vxpose.xlu0.b32.cont [8/16] 0.0, 128
        %1003 = vxpose.xlu0.b32.cont [9/16] 0.0, 128
        %1004 = vxpose.xlu0.b32.cont [10/16] 0.0, 128
        %1005 = vxpose.xlu0.b32.cont [11/16] 0.0, 128
        %1006 = vxpose.xlu0.b32.cont [12/16] 0.0, 128
        %1007 = vxpose.xlu0.b32.cont [13/16] 0.0, 128
        %1008 = vxpose.xlu0.b32.cont [14/16] 0.0, 128
        %1009 = vxpose.xlu0.b32.cont [15/16] 0.0, 128
        %1010 = vxpose.xlu0.b32.end [16/16] 0.0, 128
        %v1011 = vpop.trf.xlu0
        %v1012 = vpop.trf.xlu0
        %v1013 = vpop.trf.xlu0
        %v1014 = vpop.trf.xlu0
        %v1015 = vpop.trf.xlu0
        %v1016 = vpop.trf.xlu0
        %v1017 = vpop.trf.xlu0
        %v1018 = vpop.trf.xlu0
        %v1019 = vpop.trf.xlu0
        %v1020 = vpop.trf.xlu0
        %v1021 = vpop.trf.xlu0
        %v1022 = vpop.trf.xlu0
        %v1023 = vpop.trf.xlu0
        %v1024 = vpop.trf.xlu0
        %v1025 = vpop.trf.xlu0
        %v1026 = vpop.trf.xlu0
        %1027 = vxpose.xlu0.b32.start [1/16] %v913, 128
        %1028 = vxpose.xlu0.b32.cont [2/16] 0.0, 128
        %1029 = vxpose.xlu0.b32.cont [3/16] 0.0, 128
        %1030 = vxpose.xlu0.b32.cont [4/16] 0.0, 128
        %1031 = vxpose.xlu0.b32.cont [5/16] 0.0, 128
        %1032 = vxpose.xlu0.b32.cont [6/16] 0.0, 128
        %1033 = vxpose.xlu0.b32.cont [7/16] 0.0, 128
        %1034 = vxpose.xlu0.b32.cont [8/16] 0.0, 128
        %1035 = vxpose.xlu0.b32.cont [9/16] 0.0, 128
        %1036 = vxpose.xlu0.b32.cont [10/16] 0.0, 128
        %1037 = vxpose.xlu0.b32.cont [11/16] 0.0, 128
        %1038 = vxpose.xlu0.b32.cont [12/16] 0.0, 128
        %1039 = vxpose.xlu0.b32.cont [13/16] 0.0, 128
        %1040 = vxpose.xlu0.b32.cont [14/16] 0.0, 128
        %1041 = vxpose.xlu0.b32.cont [15/16] 0.0, 128
        %1042 = vxpose.xlu0.b32.end [16/16] 0.0, 128
        %v1043 = vpop.trf.xlu0
        %v1044 = vpop.trf.xlu0
        %v1045 = vpop.trf.xlu0
        %v1046 = vpop.trf.xlu0
        %v1047 = vpop.trf.xlu0
        %v1048 = vpop.trf.xlu0
        %v1049 = vpop.trf.xlu0
        %v1050 = vpop.trf.xlu0
        %v1051 = vpop.trf.xlu0
        %v1052 = vpop.trf.xlu0
        %v1053 = vpop.trf.xlu0
        %v1054 = vpop.trf.xlu0
        %v1055 = vpop.trf.xlu0
        %v1056 = vpop.trf.xlu0
        %v1057 = vpop.trf.xlu0
        %v1058 = vpop.trf.xlu0
        %vm1059 = vcmask 64512
        %v1060 = vsel %vm1059, %v897, 0
        %1062 = vmatprep.subr.mxu0 0.0
        %1063 = vmatpush1.msra.mxu0 %v947
        %1064 = vmatprep.subr.mxu0 0.0
        %1065 = vmatpush1.msra.mxu0 0.0
        %1066 = vmatprep.subr.mxu0 0.0
        %1067 = vmatpush1.msra.mxu0 0.0
        %1068 = vmatprep.subr.mxu0 0.0
        %1069 = vmatpush1.msra.mxu0 0.0
        %1070 = vmatprep.subr.mxu0 0.0
        %1071 = vmatpush1.msra.mxu0 0.0
        %1072 = vmatprep.subr.mxu0 0.0
        %1073 = vmatpush1.msra.mxu0 0.0
        %1074 = vmatprep.subr.mxu0 0.0
        %1075 = vmatpush1.msra.mxu0 0.0
        %1076 = vmatprep.subr.mxu0 0.0
        %1077 = vmatpush1.msra.mxu0 0.0
        %1078 = vmatprep.subr.mxu0 0.0
        %1079 = vmatpush1.msra.mxu0 0.0
        %1080 = vmatprep.subr.mxu0 0.0
        %1081 = vmatpush1.msra.mxu0 0.0
        %1082 = vmatprep.subr.mxu0 0.0
        %1083 = vmatpush1.msra.mxu0 0.0
        %1084 = vmatprep.subr.mxu0 0.0
        %1085 = vmatpush1.msra.mxu0 0.0
        %1086 = vmatprep.subr.mxu0 0.0
        %1087 = vmatpush1.msra.mxu0 0.0
        %1088 = vmatprep.subr.mxu0 0.0
        %1089 = vmatpush1.msra.mxu0 0.0
        %1090 = vmatprep.subr.mxu0 0.0
        %1091 = vmatpush1.msra.mxu0 0.0
        %1092 = vmatprep.subr.mxu0 0.0
        %1093 = vmatpush1.msra.mxu0 0.0
        %1094 = vmatprep.subr.mxu0 0.0
        %1095 = vmatpush1.msra.mxu0 0.0
        %1096 = vmatprep.subr.mxu0 0.0
        %1097 = vmatpush1.msra.mxu0 0.0
        %1098 = vmatprep.subr.mxu0 0.0
        %1099 = vmatpush1.msra.mxu0 0.0
        %1100 = vmatprep.subr.mxu0 0.0
        %1101 = vmatpush1.msra.mxu0 0.0
        %1102 = vmatprep.subr.mxu0 0.0
        %1103 = vmatpush1.msra.mxu0 0.0
        %1104 = vmatprep.subr.mxu0 0.0
        %1105 = vmatpush1.msra.mxu0 0.0
        %1106 = vmatprep.subr.mxu0 0.0
        %1107 = vmatpush1.msra.mxu0 0.0
        %1108 = vmatprep.subr.mxu0 0.0
        %1109 = vmatpush1.msra.mxu0 0.0
        %1110 = vmatprep.subr.mxu0 0.0
        %1111 = vmatpush1.msra.mxu0 0.0
        %1112 = vmatprep.subr.mxu0 0.0
        %1113 = vmatpush1.msra.mxu0 0.0
        %1114 = vmatprep.subr.mxu0 0.0
        %1115 = vmatpush1.msra.mxu0 0.0
        %1116 = vmatprep.subr.mxu0 0.0
        %1117 = vmatpush1.msra.mxu0 0.0
        %1118 = vmatprep.subr.mxu0 0.0
        %1119 = vmatpush1.msra.mxu0 0.0
        %1120 = vmatprep.subr.mxu0 0.0
        %1121 = vmatpush1.msra.mxu0 0.0
        %1122 = vmatprep.subr.mxu0 0.0
        %1123 = vmatpush1.msra.mxu0 0.0
        %1124 = vmatprep.subr.mxu0 0.0
        %1125 = vmatpush1.msra.mxu0 0.0
        %1126 = vmatprep.mubr.f32.mxu0 0.0
        %1127 = vmatmul.mubr.f32.gmra.mrb[0].mxu0 %v1060
        %v1128 = vpop.f32.mrb[0].mxu0
        %v1129 = vadd.f32 %v929, %v1128
        %v1130 = vpop.f32.mrb[0].mxu0
        %1131 = vdwg.mxu0
        %v1132 = vsel %vm1059, %v900, 0
        %1134 = vmatprep.subr.mxu0 0.0
        %1135 = vmatpush1.msra.mxu0 %v979
        %1136 = vmatprep.subr.mxu0 0.0
        %1137 = vmatpush1.msra.mxu0 0.0
        %1138 = vmatprep.subr.mxu0 0.0
        %1139 = vmatpush1.msra.mxu0 0.0
        %1140 = vmatprep.subr.mxu0 0.0
        %1141 = vmatpush1.msra.mxu0 0.0
        %1142 = vmatprep.subr.mxu0 0.0
        %1143 = vmatpush1.msra.mxu0 0.0
        %1144 = vmatprep.subr.mxu0 0.0
        %1145 = vmatpush1.msra.mxu0 0.0
        %1146 = vmatprep.subr.mxu0 0.0
        %1147 = vmatpush1.msra.mxu0 0.0
        %1148 = vmatprep.subr.mxu0 0.0
        %1149 = vmatpush1.msra.mxu0 0.0
        %1150 = vmatprep.subr.mxu0 0.0
        %1151 = vmatpush1.msra.mxu0 0.0
        %1152 = vmatprep.subr.mxu0 0.0
        %1153 = vmatpush1.msra.mxu0 0.0
        %1154 = vmatprep.subr.mxu0 0.0
        %1155 = vmatpush1.msra.mxu0 0.0
        %1156 = vmatprep.subr.mxu0 0.0
        %1157 = vmatpush1.msra.mxu0 0.0
        %1158 = vmatprep.subr.mxu0 0.0
        %1159 = vmatpush1.msra.mxu0 0.0
        %1160 = vmatprep.subr.mxu0 0.0
        %1161 = vmatpush1.msra.mxu0 0.0
        %1162 = vmatprep.subr.mxu0 0.0
        %1163 = vmatpush1.msra.mxu0 0.0
        %1164 = vmatprep.subr.mxu0 0.0
        %1165 = vmatpush1.msra.mxu0 0.0
        %1166 = vmatprep.subr.mxu0 0.0
        %1167 = vmatpush1.msra.mxu0 0.0
        %1168 = vmatprep.subr.mxu0 0.0
        %1169 = vmatpush1.msra.mxu0 0.0
        %1170 = vmatprep.subr.mxu0 0.0
        %1171 = vmatpush1.msra.mxu0 0.0
        %1172 = vmatprep.subr.mxu0 0.0
        %1173 = vmatpush1.msra.mxu0 0.0
        %1174 = vmatprep.subr.mxu0 0.0
        %1175 = vmatpush1.msra.mxu0 0.0
        %1176 = vmatprep.subr.mxu0 0.0
        %1177 = vmatpush1.msra.mxu0 0.0
        %1178 = vmatprep.subr.mxu0 0.0
        %1179 = vmatpush1.msra.mxu0 0.0
        %1180 = vmatprep.subr.mxu0 0.0
        %1181 = vmatpush1.msra.mxu0 0.0
        %1182 = vmatprep.subr.mxu0 0.0
        %1183 = vmatpush1.msra.mxu0 0.0
        %1184 = vmatprep.subr.mxu0 0.0
        %1185 = vmatpush1.msra.mxu0 0.0
        %1186 = vmatprep.subr.mxu0 0.0
        %1187 = vmatpush1.msra.mxu0 0.0
        %1188 = vmatprep.subr.mxu0 0.0
        %1189 = vmatpush1.msra.mxu0 0.0
        %1190 = vmatprep.subr.mxu0 0.0
        %1191 = vmatpush1.msra.mxu0 0.0
        %1192 = vmatprep.subr.mxu0 0.0
        %1193 = vmatpush1.msra.mxu0 0.0
        %1194 = vmatprep.subr.mxu0 0.0
        %1195 = vmatpush1.msra.mxu0 0.0
        %1196 = vmatprep.subr.mxu0 0.0
        %1197 = vmatpush1.msra.mxu0 0.0
        %1198 = vmatprep.mubr.f32.mxu0 0.0
        %1199 = vmatmul.mubr.f32.gmra.mrb[0].mxu0 %v1132
        %v1200 = vpop.f32.mrb[0].mxu0
        %v1201 = vadd.f32 %v929, %v1200
        %v1202 = vpop.f32.mrb[0].mxu0
        %1203 = vdwg.mxu0
        %v1204 = vsel %vm1059, %v902, 0
        %1206 = vmatprep.subr.mxu0 0.0
        %1207 = vmatpush1.msra.mxu0 %v1011
        %1208 = vmatprep.subr.mxu0 0.0
        %1209 = vmatpush1.msra.mxu0 0.0
        %1210 = vmatprep.subr.mxu0 0.0
        %1211 = vmatpush1.msra.mxu0 0.0
        %1212 = vmatprep.subr.mxu0 0.0
        %1213 = vmatpush1.msra.mxu0 0.0
        %1214 = vmatprep.subr.mxu0 0.0
        %1215 = vmatpush1.msra.mxu0 0.0
        %1216 = vmatprep.subr.mxu0 0.0
        %1217 = vmatpush1.msra.mxu0 0.0
        %1218 = vmatprep.subr.mxu0 0.0
        %1219 = vmatpush1.msra.mxu0 0.0
        %1220 = vmatprep.subr.mxu0 0.0
        %1221 = vmatpush1.msra.mxu0 0.0
        %1222 = vmatprep.subr.mxu0 0.0
        %1223 = vmatpush1.msra.mxu0 0.0
        %1224 = vmatprep.subr.mxu0 0.0
        %1225 = vmatpush1.msra.mxu0 0.0
        %1226 = vmatprep.subr.mxu0 0.0
        %1227 = vmatpush1.msra.mxu0 0.0
        %1228 = vmatprep.subr.mxu0 0.0
        %1229 = vmatpush1.msra.mxu0 0.0
        %1230 = vmatprep.subr.mxu0 0.0
        %1231 = vmatpush1.msra.mxu0 0.0
        %1232 = vmatprep.subr.mxu0 0.0
        %1233 = vmatpush1.msra.mxu0 0.0
        %1234 = vmatprep.subr.mxu0 0.0
        %1235 = vmatpush1.msra.mxu0 0.0
        %1236 = vmatprep.subr.mxu0 0.0
        %1237 = vmatpush1.msra.mxu0 0.0
        %1238 = vmatprep.subr.mxu0 0.0
        %1239 = vmatpush1.msra.mxu0 0.0
        %1240 = vmatprep.subr.mxu0 0.0
        %1241 = vmatpush1.msra.mxu0 0.0
        %1242 = vmatprep.subr.mxu0 0.0
        %1243 = vmatpush1.msra.mxu0 0.0
        %1244 = vmatprep.subr.mxu0 0.0
        %1245 = vmatpush1.msra.mxu0 0.0
        %1246 = vmatprep.subr.mxu0 0.0
        %1247 = vmatpush1.msra.mxu0 0.0
        %1248 = vmatprep.subr.mxu0 0.0
        %1249 = vmatpush1.msra.mxu0 0.0
        %1250 = vmatprep.subr.mxu0 0.0
        %1251 = vmatpush1.msra.mxu0 0.0
        %1252 = vmatprep.subr.mxu0 0.0
        %1253 = vmatpush1.msra.mxu0 0.0
        %1254 = vmatprep.subr.mxu0 0.0
        %1255 = vmatpush1.msra.mxu0 0.0
        %1256 = vmatprep.subr.mxu0 0.0
        %1257 = vmatpush1.msra.mxu0 0.0
        %1258 = vmatprep.subr.mxu0 0.0
        %1259 = vmatpush1.msra.mxu0 0.0
        %1260 = vmatprep.subr.mxu0 0.0
        %1261 = vmatpush1.msra.mxu0 0.0
        %1262 = vmatprep.subr.mxu0 0.0
        %1263 = vmatpush1.msra.mxu0 0.0
        %1264 = vmatprep.subr.mxu0 0.0
        %1265 = vmatpush1.msra.mxu0 0.0
        %1266 = vmatprep.subr.mxu0 0.0
        %1267 = vmatpush1.msra.mxu0 0.0
        %1268 = vmatprep.subr.mxu0 0.0
        %1269 = vmatpush1.msra.mxu0 0.0
        %1270 = vmatprep.mubr.f32.mxu0 0.0
        %1271 = vmatmul.mubr.f32.gmra.mrb[0].mxu0 %v1204
        %v1272 = vpop.f32.mrb[0].mxu0
        %v1273 = vadd.f32 %v929, %v1272
        %v1274 = vpop.f32.mrb[0].mxu0
        %1275 = vdwg.mxu0
        %v1276 = vsel %vm1059, %v904, 0
        %1278 = vmatprep.subr.mxu0 0.0
        %1279 = vmatpush1.msra.mxu0 %v1043
        %1280 = vmatprep.subr.mxu0 0.0
        %1281 = vmatpush1.msra.mxu0 0.0
        %1282 = vmatprep.subr.mxu0 0.0
        %1283 = vmatpush1.msra.mxu0 0.0
        %1284 = vmatprep.subr.mxu0 0.0
        %1285 = vmatpush1.msra.mxu0 0.0
        %1286 = vmatprep.subr.mxu0 0.0
        %1287 = vmatpush1.msra.mxu0 0.0
        %1288 = vmatprep.subr.mxu0 0.0
        %1289 = vmatpush1.msra.mxu0 0.0
        %1290 = vmatprep.subr.mxu0 0.0
        %1291 = vmatpush1.msra.mxu0 0.0
        %1292 = vmatprep.subr.mxu0 0.0
        %1293 = vmatpush1.msra.mxu0 0.0
        %1294 = vmatprep.subr.mxu0 0.0
        %1295 = vmatpush1.msra.mxu0 0.0
        %1296 = vmatprep.subr.mxu0 0.0
        %1297 = vmatpush1.msra.mxu0 0.0
        %1298 = vmatprep.subr.mxu0 0.0
        %1299 = vmatpush1.msra.mxu0 0.0
        %1300 = vmatprep.subr.mxu0 0.0
        %1301 = vmatpush1.msra.mxu0 0.0
        %1302 = vmatprep.subr.mxu0 0.0
        %1303 = vmatpush1.msra.mxu0 0.0
        %1304 = vmatprep.subr.mxu0 0.0
        %1305 = vmatpush1.msra.mxu0 0.0
        %1306 = vmatprep.subr.mxu0 0.0
        %1307 = vmatpush1.msra.mxu0 0.0
        %1308 = vmatprep.subr.mxu0 0.0
        %1309 = vmatpush1.msra.mxu0 0.0
        %1310 = vmatprep.subr.mxu0 0.0
        %1311 = vmatpush1.msra.mxu0 0.0
        %1312 = vmatprep.subr.mxu0 0.0
        %1313 = vmatpush1.msra.mxu0 0.0
        %1314 = vmatprep.subr.mxu0 0.0
        %1315 = vmatpush1.msra.mxu0 0.0
        %1316 = vmatprep.subr.mxu0 0.0
        %1317 = vmatpush1.msra.mxu0 0.0
        %1318 = vmatprep.subr.mxu0 0.0
        %1319 = vmatpush1.msra.mxu0 0.0
        %1320 = vmatprep.subr.mxu0 0.0
        %1321 = vmatpush1.msra.mxu0 0.0
        %1322 = vmatprep.subr.mxu0 0.0
        %1323 = vmatpush1.msra.mxu0 0.0
        %1324 = vmatprep.subr.mxu0 0.0
        %1325 = vmatpush1.msra.mxu0 0.0
        %1326 = vmatprep.subr.mxu0 0.0
        %1327 = vmatpush1.msra.mxu0 0.0
        %1328 = vmatprep.subr.mxu0 0.0
        %1329 = vmatpush1.msra.mxu0 0.0
        %1330 = vmatprep.subr.mxu0 0.0
        %1331 = vmatpush1.msra.mxu0 0.0
        %1332 = vmatprep.subr.mxu0 0.0
        %1333 = vmatpush1.msra.mxu0 0.0
        %1334 = vmatprep.subr.mxu0 0.0
        %1335 = vmatpush1.msra.mxu0 0.0
        %1336 = vmatprep.subr.mxu0 0.0
        %1337 = vmatpush1.msra.mxu0 0.0
        %1338 = vmatprep.subr.mxu0 0.0
        %1339 = vmatpush1.msra.mxu0 0.0
        %1340 = vmatprep.subr.mxu0 0.0
        %1341 = vmatpush1.msra.mxu0 0.0
        %1342 = vmatprep.mubr.f32.mxu0 0.0
        %1343 = vmatmul.mubr.f32.gmra.mrb[0].mxu0 %v1276
        %v1344 = vpop.f32.mrb[0].mxu0
        %v1345 = vadd.f32 %v929, %v1344
        %v1346 = vpop.f32.mrb[0].mxu0
        %1347 = vdwg.mxu0
        %v1348 = vsel %vm1059, %v1129, -inf
        %1349 = vmax.xlane.f32.xlu0 %v1348
        %v1350 = vpop.xlane.xlu0 %1349
        %v1351 = vsel %vm1059, %v1201, -inf
        %1352 = vmax.xlane.f32.xlu0 %v1351
        %v1353 = vpop.xlane.xlu0 %1352
        %v1354 = vsel %vm1059, %v1273, -inf
        %1355 = vmax.xlane.f32.xlu0 %v1354
        %v1356 = vpop.xlane.xlu0 %1355
        %v1357 = vsel %vm1059, %v1345, -inf
        %1358 = vmax.xlane.f32.xlu0 %v1357
        %v1359 = vpop.xlane.xlu0 %1358
        %v1360 = vsub.f32 %v1129, %v1350
        %v1361 = vsub.f32 %v1201, %v1353
        %v1362 = vsub.f32 %v1273, %v1356
        %v1363 = vsub.f32 %v1345, %v1359
        %v1364 = vmul.f32 %v1360, 1.442695
        %v1365 = vpow.pop %v1364
        %v1366 = vmul.f32 %v1361, 1.442695
        %v1367 = vpow.pop %v1366
        %v1368 = vmul.f32 %v1362, 1.442695
        %v1369 = vpow.pop %v1368
        %v1370 = vmul.f32 %v1363, 1.442695
        %v1371 = vpow.pop %v1370
        %v1372 = vsel %vm1059, %v1365, 0.0
        %1373 = vadd.xlane.f32.xlu0 %v1372
        %v1374 = vpop.xlane.xlu0 %1373
        %v1375 = vsel %vm1059, %v1367, 0.0
        %1376 = vadd.xlane.f32.xlu0 %v1375
        %v1377 = vpop.xlane.xlu0 %1376
        %v1378 = vsel %vm1059, %v1369, 0.0
        %1379 = vadd.xlane.f32.xlu0 %v1378
        %v1380 = vpop.xlane.xlu0 %1379
        %v1381 = vsel %vm1059, %v1371, 0.0
        %1382 = vadd.xlane.f32.xlu0 %v1381
        %v1383 = vpop.xlane.xlu0 %1382
        %v1384 = vrcp.pop %v1374
        %v1385 = vrcp.pop %v1377
        %v1386 = vrcp.pop %v1380
        %v1387 = vrcp.pop %v1383
        %v1388 = vmul.f32 %v1374, %v1384
        %v1389 = vmul.f32 %v1377, %v1385
        %v1390 = vmul.f32 %v1380, %v1386
        %v1391 = vmul.f32 %v1383, %v1387
        %v1392 = vsub.f32 2.0, %v1388
        %v1393 = vsub.f32 2.0, %v1389
        %v1394 = vsub.f32 2.0, %v1390
        %v1395 = vsub.f32 2.0, %v1391
        %v1396 = vmul.f32 %v1384, %v1392
        %v1397 = vmul.f32 %v1385, %v1393
        %v1398 = vmul.f32 %v1386, %v1394
        %v1399 = vmul.f32 %v1387, %v1395
        %v1400 = vmul.f32 %v1365, %v1396
        %v1401 = vmul.f32 %v1367, %v1397
        %v1402 = vmul.f32 %v1369, %v1398
        %v1403 = vmul.f32 %v1371, %v1399
        %1404 = vxpose.xlu0.b32.start [1/16] %v894, 128
        %1405 = vxpose.xlu0.b32.cont [2/16] 0.0, 128
        %1406 = vxpose.xlu0.b32.cont [3/16] 0.0, 128
        %1407 = vxpose.xlu0.b32.cont [4/16] 0.0, 128
        %1408 = vxpose.xlu0.b32.cont [5/16] 0.0, 128
        %1409 = vxpose.xlu0.b32.cont [6/16] 0.0, 128
        %1410 = vxpose.xlu0.b32.cont [7/16] 0.0, 128
        %1411 = vxpose.xlu0.b32.cont [8/16] 0.0, 128
        %1412 = vxpose.xlu0.b32.cont [9/16] 0.0, 128
        %1413 = vxpose.xlu0.b32.cont [10/16] 0.0, 128
        %1414 = vxpose.xlu0.b32.cont [11/16] 0.0, 128
        %1415 = vxpose.xlu0.b32.cont [12/16] 0.0, 128
        %1416 = vxpose.xlu0.b32.cont [13/16] 0.0, 128
        %1417 = vxpose.xlu0.b32.cont [14/16] 0.0, 128
        %1418 = vxpose.xlu0.b32.cont [15/16] 0.0, 128
        %1419 = vxpose.xlu0.b32.end [16/16] 0.0, 128
        %v1420 = vpop.trf.xlu0
        %v1421 = vpop.trf.xlu0
        %v1422 = vpop.trf.xlu0
        %v1423 = vpop.trf.xlu0
        %v1424 = vpop.trf.xlu0
        %v1425 = vpop.trf.xlu0
        %v1426 = vpop.trf.xlu0
        %v1427 = vpop.trf.xlu0
        %v1428 = vpop.trf.xlu0
        %v1429 = vpop.trf.xlu0
        %v1430 = vpop.trf.xlu0
        %v1431 = vpop.trf.xlu0
        %v1432 = vpop.trf.xlu0
        %v1433 = vpop.trf.xlu0
        %v1434 = vpop.trf.xlu0
        %v1435 = vpop.trf.xlu0
        %1436 = vxpose.xlu0.b32.start [1/16] %v917, 128
        %1437 = vxpose.xlu0.b32.cont [2/16] 0.0, 128
        %1438 = vxpose.xlu0.b32.cont [3/16] 0.0, 128
        %1439 = vxpose.xlu0.b32.cont [4/16] 0.0, 128
        %1440 = vxpose.xlu0.b32.cont [5/16] 0.0, 128
        %1441 = vxpose.xlu0.b32.cont [6/16] 0.0, 128
        %1442 = vxpose.xlu0.b32.cont [7/16] 0.0, 128
        %1443 = vxpose.xlu0.b32.cont [8/16] 0.0, 128
        %1444 = vxpose.xlu0.b32.cont [9/16] 0.0, 128
        %1445 = vxpose.xlu0.b32.cont [10/16] 0.0, 128
        %1446 = vxpose.xlu0.b32.cont [11/16] 0.0, 128
        %1447 = vxpose.xlu0.b32.cont [12/16] 0.0, 128
        %1448 = vxpose.xlu0.b32.cont [13/16] 0.0, 128
        %1449 = vxpose.xlu0.b32.cont [14/16] 0.0, 128
        %1450 = vxpose.xlu0.b32.cont [15/16] 0.0, 128
        %1451 = vxpose.xlu0.b32.end [16/16] 0.0, 128
        %v1452 = vpop.trf.xlu0
        %v1453 = vpop.trf.xlu0
        %v1454 = vpop.trf.xlu0
        %v1455 = vpop.trf.xlu0
        %v1456 = vpop.trf.xlu0
        %v1457 = vpop.trf.xlu0
        %v1458 = vpop.trf.xlu0
        %v1459 = vpop.trf.xlu0
        %v1460 = vpop.trf.xlu0
        %v1461 = vpop.trf.xlu0
        %v1462 = vpop.trf.xlu0
        %v1463 = vpop.trf.xlu0
        %v1464 = vpop.trf.xlu0
        %v1465 = vpop.trf.xlu0
        %v1466 = vpop.trf.xlu0
        %v1467 = vpop.trf.xlu0
        %1468 = vxpose.xlu0.b32.start [1/16] %v920, 128
        %1469 = vxpose.xlu0.b32.cont [2/16] 0.0, 128
        %1470 = vxpose.xlu0.b32.cont [3/16] 0.0, 128
        %1471 = vxpose.xlu0.b32.cont [4/16] 0.0, 128
        %1472 = vxpose.xlu0.b32.cont [5/16] 0.0, 128
        %1473 = vxpose.xlu0.b32.cont [6/16] 0.0, 128
        %1474 = vxpose.xlu0.b32.cont [7/16] 0.0, 128
        %1475 = vxpose.xlu0.b32.cont [8/16] 0.0, 128
        %1476 = vxpose.xlu0.b32.cont [9/16] 0.0, 128
        %1477 = vxpose.xlu0.b32.cont [10/16] 0.0, 128
        %1478 = vxpose.xlu0.b32.cont [11/16] 0.0, 128
        %1479 = vxpose.xlu0.b32.cont [12/16] 0.0, 128
        %1480 = vxpose.xlu0.b32.cont [13/16] 0.0, 128
        %1481 = vxpose.xlu0.b32.cont [14/16] 0.0, 128
        %1482 = vxpose.xlu0.b32.cont [15/16] 0.0, 128
        %1483 = vxpose.xlu0.b32.end [16/16] 0.0, 128
        %v1484 = vpop.trf.xlu0
        %v1485 = vpop.trf.xlu0
        %v1486 = vpop.trf.xlu0
        %v1487 = vpop.trf.xlu0
        %v1488 = vpop.trf.xlu0
        %v1489 = vpop.trf.xlu0
        %v1490 = vpop.trf.xlu0
        %v1491 = vpop.trf.xlu0
        %v1492 = vpop.trf.xlu0
        %v1493 = vpop.trf.xlu0
        %v1494 = vpop.trf.xlu0
        %v1495 = vpop.trf.xlu0
        %v1496 = vpop.trf.xlu0
        %v1497 = vpop.trf.xlu0
        %v1498 = vpop.trf.xlu0
        %v1499 = vpop.trf.xlu0
        %1500 = vxpose.xlu0.b32.start [1/16] %v923, 128
        %1501 = vxpose.xlu0.b32.cont [2/16] 0.0, 128
        %1502 = vxpose.xlu0.b32.cont [3/16] 0.0, 128
        %1503 = vxpose.xlu0.b32.cont [4/16] 0.0, 128
        %1504 = vxpose.xlu0.b32.cont [5/16] 0.0, 128
        %1505 = vxpose.xlu0.b32.cont [6/16] 0.0, 128
        %1506 = vxpose.xlu0.b32.cont [7/16] 0.0, 128
        %1507 = vxpose.xlu0.b32.cont [8/16] 0.0, 128
        %1508 = vxpose.xlu0.b32.cont [9/16] 0.0, 128
        %1509 = vxpose.xlu0.b32.cont [10/16] 0.0, 128
        %1510 = vxpose.xlu0.b32.cont [11/16] 0.0, 128
        %1511 = vxpose.xlu0.b32.cont [12/16] 0.0, 128
        %1512 = vxpose.xlu0.b32.cont [13/16] 0.0, 128
        %1513 = vxpose.xlu0.b32.cont [14/16] 0.0, 128
        %1514 = vxpose.xlu0.b32.cont [15/16] 0.0, 128
        %1515 = vxpose.xlu0.b32.end [16/16] 0.0, 128
        %v1516 = vpop.trf.xlu0
        %v1517 = vpop.trf.xlu0
        %v1518 = vpop.trf.xlu0
        %v1519 = vpop.trf.xlu0
        %v1520 = vpop.trf.xlu0
        %v1521 = vpop.trf.xlu0
        %v1522 = vpop.trf.xlu0
        %v1523 = vpop.trf.xlu0
        %v1524 = vpop.trf.xlu0
        %v1525 = vpop.trf.xlu0
        %v1526 = vpop.trf.xlu0
        %v1527 = vpop.trf.xlu0
        %v1528 = vpop.trf.xlu0
        %v1529 = vpop.trf.xlu0
        %v1530 = vpop.trf.xlu0
        %v1531 = vpop.trf.xlu0
        %v1533 = vsel %vm1059, %v1420, 0
        %v1536 = vsel %vm1059, %v1400, 0
        %1538 = vmatprep.subr.mxu0 0.0
        %1539 = vmatpush1.xpose.msra.mxu0 %v1536
        %1540 = vmatprep.subr.mxu0 0.0
        %1541 = vmatpush1.xpose.msra.mxu0 0.0
        %1542 = vmatprep.subr.mxu0 0.0
        %1543 = vmatpush1.xpose.msra.mxu0 0.0
        %1544 = vmatprep.subr.mxu0 0.0
        %1545 = vmatpush1.xpose.msra.mxu0 0.0
        %1546 = vmatprep.subr.mxu0 0.0
        %1547 = vmatpush1.xpose.msra.mxu0 0.0
        %1548 = vmatprep.subr.mxu0 0.0
        %1549 = vmatpush1.xpose.msra.mxu0 0.0
        %1550 = vmatprep.subr.mxu0 0.0
        %1551 = vmatpush1.xpose.msra.mxu0 0.0
        %1552 = vmatprep.subr.mxu0 0.0
        %1553 = vmatpush1.xpose.msra.mxu0 0.0
        %1554 = vmatprep.subr.mxu0 0.0
        %1555 = vmatpush1.xpose.msra.mxu0 0.0
        %1556 = vmatprep.subr.mxu0 0.0
        %1557 = vmatpush1.xpose.msra.mxu0 0.0
        %1558 = vmatprep.subr.mxu0 0.0
        %1559 = vmatpush1.xpose.msra.mxu0 0.0
        %1560 = vmatprep.subr.mxu0 0.0
        %1561 = vmatpush1.xpose.msra.mxu0 0.0
        %1562 = vmatprep.subr.mxu0 0.0
        %1563 = vmatpush1.xpose.msra.mxu0 0.0
        %1564 = vmatprep.subr.mxu0 0.0
        %1565 = vmatpush1.xpose.msra.mxu0 0.0
        %1566 = vmatprep.subr.mxu0 0.0
        %1567 = vmatpush1.xpose.msra.mxu0 0.0
        %1568 = vmatprep.subr.mxu0 0.0
        %1569 = vmatpush1.xpose.msra.mxu0 0.0
        %1570 = vmatprep.subr.mxu0 0.0
        %1571 = vmatpush1.xpose.msra.mxu0 0.0
        %1572 = vmatprep.subr.mxu0 0.0
        %1573 = vmatpush1.xpose.msra.mxu0 0.0
        %1574 = vmatprep.subr.mxu0 0.0
        %1575 = vmatpush1.xpose.msra.mxu0 0.0
        %1576 = vmatprep.subr.mxu0 0.0
        %1577 = vmatpush1.xpose.msra.mxu0 0.0
        %1578 = vmatprep.subr.mxu0 0.0
        %1579 = vmatpush1.xpose.msra.mxu0 0.0
        %1580 = vmatprep.subr.mxu0 0.0
        %1581 = vmatpush1.xpose.msra.mxu0 0.0
        %1582 = vmatprep.subr.mxu0 0.0
        %1583 = vmatpush1.xpose.msra.mxu0 0.0
        %1584 = vmatprep.subr.mxu0 0.0
        %1585 = vmatpush1.xpose.msra.mxu0 0.0
        %1586 = vmatprep.subr.mxu0 0.0
        %1587 = vmatpush1.xpose.msra.mxu0 0.0
        %1588 = vmatprep.subr.mxu0 0.0
        %1589 = vmatpush1.xpose.msra.mxu0 0.0
        %1590 = vmatprep.subr.mxu0 0.0
        %1591 = vmatpush1.xpose.msra.mxu0 0.0
        %1592 = vmatprep.subr.mxu0 0.0
        %1593 = vmatpush1.xpose.msra.mxu0 0.0
        %1594 = vmatprep.subr.mxu0 0.0
        %1595 = vmatpush1.xpose.msra.mxu0 0.0
        %1596 = vmatprep.subr.mxu0 0.0
        %1597 = vmatpush1.xpose.msra.mxu0 0.0
        %1598 = vmatprep.subr.mxu0 0.0
        %1599 = vmatpush1.xpose.msra.mxu0 0.0
        %1600 = vmatprep.subr.mxu0 0.0
        %1601 = vmatpush1.xpose.msra.mxu0 0.0
        %1602 = vmatprep.mubr.f32.mxu0 0.0
        %1603 = vmatmul.mubr.f32.gmra.mrb[0].mxu0 %v1533
        %v1604 = vpop.f32.mrb[0].mxu0
        %v1605 = vadd.f32 0.0, %v1604
        %v1606 = vpop.f32.mrb[0].mxu0
        %1607 = vdwg.mxu0
        %v1609 = vsel %vm1059, %v1452, 0
        %v1612 = vsel %vm1059, %v1401, 0
        %1614 = vmatprep.subr.mxu0 0.0
        %1615 = vmatpush1.xpose.msra.mxu0 %v1612
        %1616 = vmatprep.subr.mxu0 0.0
        %1617 = vmatpush1.xpose.msra.mxu0 0.0
        %1618 = vmatprep.subr.mxu0 0.0
        %1619 = vmatpush1.xpose.msra.mxu0 0.0
        %1620 = vmatprep.subr.mxu0 0.0
        %1621 = vmatpush1.xpose.msra.mxu0 0.0
        %1622 = vmatprep.subr.mxu0 0.0
        %1623 = vmatpush1.xpose.msra.mxu0 0.0
        %1624 = vmatprep.subr.mxu0 0.0
        %1625 = vmatpush1.xpose.msra.mxu0 0.0
        %1626 = vmatprep.subr.mxu0 0.0
        %1627 = vmatpush1.xpose.msra.mxu0 0.0
        %1628 = vmatprep.subr.mxu0 0.0
        %1629 = vmatpush1.xpose.msra.mxu0 0.0
        %1630 = vmatprep.subr.mxu0 0.0
        %1631 = vmatpush1.xpose.msra.mxu0 0.0
        %1632 = vmatprep.subr.mxu0 0.0
        %1633 = vmatpush1.xpose.msra.mxu0 0.0
        %1634 = vmatprep.subr.mxu0 0.0
        %1635 = vmatpush1.xpose.msra.mxu0 0.0
        %1636 = vmatprep.subr.mxu0 0.0
        %1637 = vmatpush1.xpose.msra.mxu0 0.0
        %1638 = vmatprep.subr.mxu0 0.0
        %1639 = vmatpush1.xpose.msra.mxu0 0.0
        %1640 = vmatprep.subr.mxu0 0.0
        %1641 = vmatpush1.xpose.msra.mxu0 0.0
        %1642 = vmatprep.subr.mxu0 0.0
        %1643 = vmatpush1.xpose.msra.mxu0 0.0
        %1644 = vmatprep.subr.mxu0 0.0
        %1645 = vmatpush1.xpose.msra.mxu0 0.0
        %1646 = vmatprep.subr.mxu0 0.0
        %1647 = vmatpush1.xpose.msra.mxu0 0.0
        %1648 = vmatprep.subr.mxu0 0.0
        %1649 = vmatpush1.xpose.msra.mxu0 0.0
        %1650 = vmatprep.subr.mxu0 0.0
        %1651 = vmatpush1.xpose.msra.mxu0 0.0
        %1652 = vmatprep.subr.mxu0 0.0
        %1653 = vmatpush1.xpose.msra.mxu0 0.0
        %1654 = vmatprep.subr.mxu0 0.0
        %1655 = vmatpush1.xpose.msra.mxu0 0.0
        %1656 = vmatprep.subr.mxu0 0.0
        %1657 = vmatpush1.xpose.msra.mxu0 0.0
        %1658 = vmatprep.subr.mxu0 0.0
        %1659 = vmatpush1.xpose.msra.mxu0 0.0
        %1660 = vmatprep.subr.mxu0 0.0
        %1661 = vmatpush1.xpose.msra.mxu0 0.0
        %1662 = vmatprep.subr.mxu0 0.0
        %1663 = vmatpush1.xpose.msra.mxu0 0.0
        %1664 = vmatprep.subr.mxu0 0.0
        %1665 = vmatpush1.xpose.msra.mxu0 0.0
        %1666 = vmatprep.subr.mxu0 0.0
        %1667 = vmatpush1.xpose.msra.mxu0 0.0
        %1668 = vmatprep.subr.mxu0 0.0
        %1669 = vmatpush1.xpose.msra.mxu0 0.0
        %1670 = vmatprep.subr.mxu0 0.0
        %1671 = vmatpush1.xpose.msra.mxu0 0.0
        %1672 = vmatprep.subr.mxu0 0.0
        %1673 = vmatpush1.xpose.msra.mxu0 0.0
        %1674 = vmatprep.subr.mxu0 0.0
        %1675 = vmatpush1.xpose.msra.mxu0 0.0
        %1676 = vmatprep.subr.mxu0 0.0
        %1677 = vmatpush1.xpose.msra.mxu0 0.0
        %1678 = vmatprep.mubr.f32.mxu0 0.0
        %1679 = vmatmul.mubr.f32.gmra.mrb[0].mxu0 %v1609
        %v1680 = vpop.f32.mrb[0].mxu0
        %v1681 = vadd.f32 0.0, %v1680
        %v1682 = vpop.f32.mrb[0].mxu0
        %1683 = vdwg.mxu0
        %v1685 = vsel %vm1059, %v1484, 0
        %v1688 = vsel %vm1059, %v1402, 0
        %1690 = vmatprep.subr.mxu0 0.0
        %1691 = vmatpush1.xpose.msra.mxu0 %v1688
        %1692 = vmatprep.subr.mxu0 0.0
        %1693 = vmatpush1.xpose.msra.mxu0 0.0
        %1694 = vmatprep.subr.mxu0 0.0
        %1695 = vmatpush1.xpose.msra.mxu0 0.0
        %1696 = vmatprep.subr.mxu0 0.0
        %1697 = vmatpush1.xpose.msra.mxu0 0.0
        %1698 = vmatprep.subr.mxu0 0.0
        %1699 = vmatpush1.xpose.msra.mxu0 0.0
        %1700 = vmatprep.subr.mxu0 0.0
        %1701 = vmatpush1.xpose.msra.mxu0 0.0
        %1702 = vmatprep.subr.mxu0 0.0
        %1703 = vmatpush1.xpose.msra.mxu0 0.0
        %1704 = vmatprep.subr.mxu0 0.0
        %1705 = vmatpush1.xpose.msra.mxu0 0.0
        %1706 = vmatprep.subr.mxu0 0.0
        %1707 = vmatpush1.xpose.msra.mxu0 0.0
        %1708 = vmatprep.subr.mxu0 0.0
        %1709 = vmatpush1.xpose.msra.mxu0 0.0
        %1710 = vmatprep.subr.mxu0 0.0
        %1711 = vmatpush1.xpose.msra.mxu0 0.0
        %1712 = vmatprep.subr.mxu0 0.0
        %1713 = vmatpush1.xpose.msra.mxu0 0.0
        %1714 = vmatprep.subr.mxu0 0.0
        %1715 = vmatpush1.xpose.msra.mxu0 0.0
        %1716 = vmatprep.subr.mxu0 0.0
        %1717 = vmatpush1.xpose.msra.mxu0 0.0
        %1718 = vmatprep.subr.mxu0 0.0
        %1719 = vmatpush1.xpose.msra.mxu0 0.0
        %1720 = vmatprep.subr.mxu0 0.0
        %1721 = vmatpush1.xpose.msra.mxu0 0.0
        %1722 = vmatprep.subr.mxu0 0.0
        %1723 = vmatpush1.xpose.msra.mxu0 0.0
        %1724 = vmatprep.subr.mxu0 0.0
        %1725 = vmatpush1.xpose.msra.mxu0 0.0
        %1726 = vmatprep.subr.mxu0 0.0
        %1727 = vmatpush1.xpose.msra.mxu0 0.0
        %1728 = vmatprep.subr.mxu0 0.0
        %1729 = vmatpush1.xpose.msra.mxu0 0.0
        %1730 = vmatprep.subr.mxu0 0.0
        %1731 = vmatpush1.xpose.msra.mxu0 0.0
        %1732 = vmatprep.subr.mxu0 0.0
        %1733 = vmatpush1.xpose.msra.mxu0 0.0
        %1734 = vmatprep.subr.mxu0 0.0
        %1735 = vmatpush1.xpose.msra.mxu0 0.0
        %1736 = vmatprep.subr.mxu0 0.0
        %1737 = vmatpush1.xpose.msra.mxu0 0.0
        %1738 = vmatprep.subr.mxu0 0.0
        %1739 = vmatpush1.xpose.msra.mxu0 0.0
        %1740 = vmatprep.subr.mxu0 0.0
        %1741 = vmatpush1.xpose.msra.mxu0 0.0
        %1742 = vmatprep.subr.mxu0 0.0
        %1743 = vmatpush1.xpose.msra.mxu0 0.0
        %1744 = vmatprep.subr.mxu0 0.0
        %1745 = vmatpush1.xpose.msra.mxu0 0.0
        %1746 = vmatprep.subr.mxu0 0.0
        %1747 = vmatpush1.xpose.msra.mxu0 0.0
        %1748 = vmatprep.subr.mxu0 0.0
        %1749 = vmatpush1.xpose.msra.mxu0 0.0
        %1750 = vmatprep.subr.mxu0 0.0
        %1751 = vmatpush1.xpose.msra.mxu0 0.0
        %1752 = vmatprep.subr.mxu0 0.0
        %1753 = vmatpush1.xpose.msra.mxu0 0.0
        %1754 = vmatprep.mubr.f32.mxu0 0.0
        %1755 = vmatmul.mubr.f32.gmra.mrb[0].mxu0 %v1685
        %v1756 = vpop.f32.mrb[0].mxu0
        %v1757 = vadd.f32 0.0, %v1756
        %v1758 = vpop.f32.mrb[0].mxu0
        %1759 = vdwg.mxu0
        %v1761 = vsel %vm1059, %v1516, 0
        %v1764 = vsel %vm1059, %v1403, 0
        %1766 = vmatprep.subr.mxu0 0.0
        %1767 = vmatpush1.xpose.msra.mxu0 %v1764
        %1768 = vmatprep.subr.mxu0 0.0
        %1769 = vmatpush1.xpose.msra.mxu0 0.0
        %1770 = vmatprep.subr.mxu0 0.0
        %1771 = vmatpush1.xpose.msra.mxu0 0.0
        %1772 = vmatprep.subr.mxu0 0.0
        %1773 = vmatpush1.xpose.msra.mxu0 0.0
        %1774 = vmatprep.subr.mxu0 0.0
        %1775 = vmatpush1.xpose.msra.mxu0 0.0
        %1776 = vmatprep.subr.mxu0 0.0
        %1777 = vmatpush1.xpose.msra.mxu0 0.0
        %1778 = vmatprep.subr.mxu0 0.0
        %1779 = vmatpush1.xpose.msra.mxu0 0.0
        %1780 = vmatprep.subr.mxu0 0.0
        %1781 = vmatpush1.xpose.msra.mxu0 0.0
        %1782 = vmatprep.subr.mxu0 0.0
        %1783 = vmatpush1.xpose.msra.mxu0 0.0
        %1784 = vmatprep.subr.mxu0 0.0
        %1785 = vmatpush1.xpose.msra.mxu0 0.0
        %1786 = vmatprep.subr.mxu0 0.0
        %1787 = vmatpush1.xpose.msra.mxu0 0.0
        %1788 = vmatprep.subr.mxu0 0.0
        %1789 = vmatpush1.xpose.msra.mxu0 0.0
        %1790 = vmatprep.subr.mxu0 0.0
        %1791 = vmatpush1.xpose.msra.mxu0 0.0
        %1792 = vmatprep.subr.mxu0 0.0
        %1793 = vmatpush1.xpose.msra.mxu0 0.0
        %1794 = vmatprep.subr.mxu0 0.0
        %1795 = vmatpush1.xpose.msra.mxu0 0.0
        %1796 = vmatprep.subr.mxu0 0.0
        %1797 = vmatpush1.xpose.msra.mxu0 0.0
        %1798 = vmatprep.subr.mxu0 0.0
        %1799 = vmatpush1.xpose.msra.mxu0 0.0
        %1800 = vmatprep.subr.mxu0 0.0
        %1801 = vmatpush1.xpose.msra.mxu0 0.0
        %1802 = vmatprep.subr.mxu0 0.0
        %1803 = vmatpush1.xpose.msra.mxu0 0.0
        %1804 = vmatprep.subr.mxu0 0.0
        %1805 = vmatpush1.xpose.msra.mxu0 0.0
        %1806 = vmatprep.subr.mxu0 0.0
        %1807 = vmatpush1.xpose.msra.mxu0 0.0
        %1808 = vmatprep.subr.mxu0 0.0
        %1809 = vmatpush1.xpose.msra.mxu0 0.0
        %1810 = vmatprep.subr.mxu0 0.0
        %1811 = vmatpush1.xpose.msra.mxu0 0.0
        %1812 = vmatprep.subr.mxu0 0.0
        %1813 = vmatpush1.xpose.msra.mxu0 0.0
        %1814 = vmatprep.subr.mxu0 0.0
        %1815 = vmatpush1.xpose.msra.mxu0 0.0
        %1816 = vmatprep.subr.mxu0 0.0
        %1817 = vmatpush1.xpose.msra.mxu0 0.0
        %1818 = vmatprep.subr.mxu0 0.0
        %1819 = vmatpush1.xpose.msra.mxu0 0.0
        %1820 = vmatprep.subr.mxu0 0.0
        %1821 = vmatpush1.xpose.msra.mxu0 0.0
        %1822 = vmatprep.subr.mxu0 0.0
        %1823 = vmatpush1.xpose.msra.mxu0 0.0
        %1824 = vmatprep.subr.mxu0 0.0
        %1825 = vmatpush1.xpose.msra.mxu0 0.0
        %1826 = vmatprep.subr.mxu0 0.0
        %1827 = vmatpush1.xpose.msra.mxu0 0.0
        %1828 = vmatprep.subr.mxu0 0.0
        %1829 = vmatpush1.xpose.msra.mxu0 0.0
        %1830 = vmatprep.mubr.f32.mxu0 0.0
        %1831 = vmatmul.mubr.f32.gmra.mrb[0].mxu0 %v1761
        %v1832 = vpop.f32.mrb[0].mxu0
        %v1833 = vadd.f32 0.0, %v1832
        %v1834 = vpop.f32.mrb[0].mxu0
        %1835 = vdwg.mxu0
        %1836 = vxpose.xlu0.b32.start [1/16] %v1605, 128
        %1837 = vxpose.xlu0.b32.cont [2/16] 0.0, 128
        %1838 = vxpose.xlu0.b32.cont [3/16] 0.0, 128
        %1839 = vxpose.xlu0.b32.cont [4/16] 0.0, 128
        %1840 = vxpose.xlu0.b32.cont [5/16] 0.0, 128
        %1841 = vxpose.xlu0.b32.cont [6/16] 0.0, 128
        %1842 = vxpose.xlu0.b32.cont [7/16] 0.0, 128
        %1843 = vxpose.xlu0.b32.cont [8/16] 0.0, 128
        %1844 = vxpose.xlu0.b32.cont [9/16] 0.0, 128
        %1845 = vxpose.xlu0.b32.cont [10/16] 0.0, 128
        %1846 = vxpose.xlu0.b32.cont [11/16] 0.0, 128
        %1847 = vxpose.xlu0.b32.cont [12/16] 0.0, 128
        %1848 = vxpose.xlu0.b32.cont [13/16] 0.0, 128
        %1849 = vxpose.xlu0.b32.cont [14/16] 0.0, 128
        %1850 = vxpose.xlu0.b32.cont [15/16] 0.0, 128
        %1851 = vxpose.xlu0.b32.end [16/16] 0.0, 128
        %v1852 = vpop.trf.xlu0
        %v1853 = vpop.trf.xlu0
        %v1854 = vpop.trf.xlu0
        %v1855 = vpop.trf.xlu0
        %v1856 = vpop.trf.xlu0
        %v1857 = vpop.trf.xlu0
        %v1858 = vpop.trf.xlu0
        %v1859 = vpop.trf.xlu0
        %v1860 = vpop.trf.xlu0
        %v1861 = vpop.trf.xlu0
        %v1862 = vpop.trf.xlu0
        %v1863 = vpop.trf.xlu0
        %v1864 = vpop.trf.xlu0
        %v1865 = vpop.trf.xlu0
        %v1866 = vpop.trf.xlu0
        %v1867 = vpop.trf.xlu0
        %1868 = vxpose.xlu0.b32.start [1/16] %v1681, 128
        %1869 = vxpose.xlu0.b32.cont [2/16] 0.0, 128
        %1870 = vxpose.xlu0.b32.cont [3/16] 0.0, 128
        %1871 = vxpose.xlu0.b32.cont [4/16] 0.0, 128
        %1872 = vxpose.xlu0.b32.cont [5/16] 0.0, 128
        %1873 = vxpose.xlu0.b32.cont [6/16] 0.0, 128
        %1874 = vxpose.xlu0.b32.cont [7/16] 0.0, 128
        %1875 = vxpose.xlu0.b32.cont [8/16] 0.0, 128
        %1876 = vxpose.xlu0.b32.cont [9/16] 0.0, 128
        %1877 = vxpose.xlu0.b32.cont [10/16] 0.0, 128
        %1878 = vxpose.xlu0.b32.cont [11/16] 0.0, 128
        %1879 = vxpose.xlu0.b32.cont [12/16] 0.0, 128
        %1880 = vxpose.xlu0.b32.cont [13/16] 0.0, 128
        %1881 = vxpose.xlu0.b32.cont [14/16] 0.0, 128
        %1882 = vxpose.xlu0.b32.cont [15/16] 0.0, 128
        %1883 = vxpose.xlu0.b32.end [16/16] 0.0, 128
        %v1884 = vpop.trf.xlu0
        %v1885 = vpop.trf.xlu0
        %v1886 = vpop.trf.xlu0
        %v1887 = vpop.trf.xlu0
        %v1888 = vpop.trf.xlu0
        %v1889 = vpop.trf.xlu0
        %v1890 = vpop.trf.xlu0
        %v1891 = vpop.trf.xlu0
        %v1892 = vpop.trf.xlu0
        %v1893 = vpop.trf.xlu0
        %v1894 = vpop.trf.xlu0
        %v1895 = vpop.trf.xlu0
        %v1896 = vpop.trf.xlu0
        %v1897 = vpop.trf.xlu0
        %v1898 = vpop.trf.xlu0
        %v1899 = vpop.trf.xlu0
        %1900 = vxpose.xlu0.b32.start [1/16] %v1757, 128
        %1901 = vxpose.xlu0.b32.cont [2/16] 0.0, 128
        %1902 = vxpose.xlu0.b32.cont [3/16] 0.0, 128
        %1903 = vxpose.xlu0.b32.cont [4/16] 0.0, 128
        %1904 = vxpose.xlu0.b32.cont [5/16] 0.0, 128
        %1905 = vxpose.xlu0.b32.cont [6/16] 0.0, 128
        %1906 = vxpose.xlu0.b32.cont [7/16] 0.0, 128
        %1907 = vxpose.xlu0.b32.cont [8/16] 0.0, 128
        %1908 = vxpose.xlu0.b32.cont [9/16] 0.0, 128
        %1909 = vxpose.xlu0.b32.cont [10/16] 0.0, 128
        %1910 = vxpose.xlu0.b32.cont [11/16] 0.0, 128
        %1911 = vxpose.xlu0.b32.cont [12/16] 0.0, 128
        %1912 = vxpose.xlu0.b32.cont [13/16] 0.0, 128
        %1913 = vxpose.xlu0.b32.cont [14/16] 0.0, 128
        %1914 = vxpose.xlu0.b32.cont [15/16] 0.0, 128
        %1915 = vxpose.xlu0.b32.end [16/16] 0.0, 128
        %v1916 = vpop.trf.xlu0
        %v1917 = vpop.trf.xlu0
        %v1918 = vpop.trf.xlu0
        %v1919 = vpop.trf.xlu0
        %v1920 = vpop.trf.xlu0
        %v1921 = vpop.trf.xlu0
        %v1922 = vpop.trf.xlu0
        %v1923 = vpop.trf.xlu0
        %v1924 = vpop.trf.xlu0
        %v1925 = vpop.trf.xlu0
        %v1926 = vpop.trf.xlu0
        %v1927 = vpop.trf.xlu0
        %v1928 = vpop.trf.xlu0
        %v1929 = vpop.trf.xlu0
        %v1930 = vpop.trf.xlu0
        %v1931 = vpop.trf.xlu0
        %1932 = vxpose.xlu0.b32.start [1/16] %v1833, 128
        %1933 = vxpose.xlu0.b32.cont [2/16] 0.0, 128
        %1934 = vxpose.xlu0.b32.cont [3/16] 0.0, 128
        %1935 = vxpose.xlu0.b32.cont [4/16] 0.0, 128
        %1936 = vxpose.xlu0.b32.cont [5/16] 0.0, 128
        %1937 = vxpose.xlu0.b32.cont [6/16] 0.0, 128
        %1938 = vxpose.xlu0.b32.cont [7/16] 0.0, 128
        %1939 = vxpose.xlu0.b32.cont [8/16] 0.0, 128
        %1940 = vxpose.xlu0.b32.cont [9/16] 0.0, 128
        %1941 = vxpose.xlu0.b32.cont [10/16] 0.0, 128
        %1942 = vxpose.xlu0.b32.cont [11/16] 0.0, 128
        %1943 = vxpose.xlu0.b32.cont [12/16] 0.0, 128
        %1944 = vxpose.xlu0.b32.cont [13/16] 0.0, 128
        %1945 = vxpose.xlu0.b32.cont [14/16] 0.0, 128
        %1946 = vxpose.xlu0.b32.cont [15/16] 0.0, 128
        %1947 = vxpose.xlu0.b32.end [16/16] 0.0, 128
        %v1948 = vpop.trf.xlu0
        %v1949 = vpop.trf.xlu0
        %v1950 = vpop.trf.xlu0
        %v1951 = vpop.trf.xlu0
        %v1952 = vpop.trf.xlu0
        %v1953 = vpop.trf.xlu0
        %v1954 = vpop.trf.xlu0
        %v1955 = vpop.trf.xlu0
        %v1956 = vpop.trf.xlu0
        %v1957 = vpop.trf.xlu0
        %v1958 = vpop.trf.xlu0
        %v1959 = vpop.trf.xlu0
        %v1960 = vpop.trf.xlu0
        %v1961 = vpop.trf.xlu0
        %v1962 = vpop.trf.xlu0
        %v1963 = vpop.trf.xlu0
        %v1964 = vcombine.low %v1852, %v1916
        %v1965 = vcombine.high %v1852, %v1916
        %v1967 = vunpack.c.l.s4 1983009808
        %v1968 = vunpack.c.0.s8 %v1967
        %v1969 = vlaneseq
        %v1970 = vshrl.u32 %v1969, 7
        %v1971 = vsub.s32 %v1968, %v1970
        %v1972 = vrot.slane %v1964, %v1971
        %v1974 = vunpack.c.l.s4 1983009808
        %v1975 = vunpack.c.0.s8 %v1974
        %v1976 = vlaneseq
        %v1977 = vshrl.u32 %v1976, 7
        %v1978 = vsub.s32 %v1975, %v1977
        %v1979 = vrot.slane %v1965, %v1978
        %v1980 = vcombine.low %v1884, %v1948
        %v1981 = vcombine.high %v1884, %v1948
        %v1983 = vunpack.c.l.s4 1983009808
        %v1984 = vunpack.c.0.s8 %v1983
        %v1985 = vlaneseq
        %v1986 = vshrl.u32 %v1985, 7
        %v1987 = vsub.s32 %v1984, %v1986
        %v1988 = vrot.slane %v1980, %v1987
        %v1990 = vunpack.c.l.s4 1983009808
        %v1991 = vunpack.c.0.s8 %v1990
        %v1992 = vlaneseq
        %v1993 = vshrl.u32 %v1992, 7
        %v1994 = vsub.s32 %v1991, %v1993
        %v1995 = vrot.slane %v1981, %v1994
        %v1996 = vcombine.low %v1972, %v1988
        %v1997 = vcombine.high %v1972, %v1988
        %v1999 = vunpack.c.l.s4 1934713408
        %v2000 = vunpack.c.0.s8 %v1999
        %v2001 = vlaneseq
        %v2002 = vshrl.u32 %v2001, 7
        %v2003 = vsub.s32 %v2000, %v2002
        %v2004 = vrot.slane %v1996, %v2003
        %v2006 = vunpack.c.l.s4 1934713408
        %v2007 = vunpack.c.0.s8 %v2006
        %v2008 = vlaneseq
        %v2009 = vshrl.u32 %v2008, 7
        %v2010 = vsub.s32 %v2007, %v2009
        %v2011 = vrot.slane %v1997, %v2010
        %v2012 = vcombine.low %v1979, %v1995
        %v2013 = vcombine.high %v1979, %v1995
        %v2015 = vunpack.c.l.s4 1934713408
        %v2016 = vunpack.c.0.s8 %v2015
        %v2017 = vlaneseq
        %v2018 = vshrl.u32 %v2017, 7
        %v2019 = vsub.s32 %v2016, %v2018
        %v2020 = vrot.slane %v2012, %v2019
        %v2022 = vunpack.c.l.s4 1934713408
        %v2023 = vunpack.c.0.s8 %v2022
        %v2024 = vlaneseq
        %v2025 = vshrl.u32 %v2024, 7
        %v2026 = vsub.s32 %v2023, %v2025
        %v2027 = vrot.slane %v2013, %v2026
        %v2028 = vcombine.high %v2004, 0.0
        %v2029 = vcombine.high %v2011, 0.0
        %v2030 = vcombine.high %v2020, 0.0
        %v2031 = vcombine.high %v2027, 0.0
        %v2032 = vcombine.low %v2004, %v2011
        %v2034 = vunpack.c.l.s4 1983009808
        %v2035 = vunpack.c.0.s8 %v2034
        %v2036 = vlaneseq
        %v2037 = vshrl.u32 %v2036, 7
        %v2038 = vsub.s32 %v2035, %v2037
        %v2039 = vrot.slane %v2032, %v2038
        %v2040 = vcombine.low %v2028, %v2029
        %v2042 = vunpack.c.l.s4 1983009808
        %v2043 = vunpack.c.0.s8 %v2042
        %v2044 = vlaneseq
        %v2045 = vshrl.u32 %v2044, 7
        %v2046 = vsub.s32 %v2043, %v2045
        %v2047 = vrot.slane %v2040, %v2046
        %v2048 = vcombine.low %v2020, %v2027
        %v2050 = vunpack.c.l.s4 1983009808
        %v2051 = vunpack.c.0.s8 %v2050
        %v2052 = vlaneseq
        %v2053 = vshrl.u32 %v2052, 7
        %v2054 = vsub.s32 %v2051, %v2053
        %v2055 = vrot.slane %v2048, %v2054
        %v2056 = vcombine.low %v2030, %v2031
        %v2058 = vunpack.c.l.s4 1983009808
        %v2059 = vunpack.c.0.s8 %v2058
        %v2060 = vlaneseq
        %v2061 = vshrl.u32 %v2060, 7
        %v2062 = vsub.s32 %v2059, %v2061
        %v2063 = vrot.slane %v2056, %v2062
        %v2064 = vcombine.low %v2039, %v2047
        %v2065 = vcombine.high %v2039, %v2047
        %v2067 = vunpack.c.l.s4 1934713408
        %v2068 = vunpack.c.0.s8 %v2067
        %v2069 = vlaneseq
        %v2070 = vshrl.u32 %v2069, 7
        %v2071 = vsub.s32 %v2068, %v2070
        %v2072 = vrot.slane %v2064, %v2071
        %v2074 = vunpack.c.l.s4 1934713408
        %v2075 = vunpack.c.0.s8 %v2074
        %v2076 = vlaneseq
        %v2077 = vshrl.u32 %v2076, 7
        %v2078 = vsub.s32 %v2075, %v2077
        %v2079 = vrot.slane %v2065, %v2078
        %v2080 = vcombine.low %v2055, %v2063
        %v2081 = vcombine.high %v2055, %v2063
        %v2083 = vunpack.c.l.s4 1934713408
        %v2084 = vunpack.c.0.s8 %v2083
        %v2085 = vlaneseq
        %v2086 = vshrl.u32 %v2085, 7
        %v2087 = vsub.s32 %v2084, %v2086
        %v2088 = vrot.slane %v2080, %v2087
        %v2090 = vunpack.c.l.s4 1934713408
        %v2091 = vunpack.c.0.s8 %v2090
        %v2092 = vlaneseq
        %v2093 = vshrl.u32 %v2092, 7
        %v2094 = vsub.s32 %v2091, %v2093
        %v2095 = vrot.slane %v2081, %v2094
        %v2096 = vcombine.low %v2072, %v2088
        %v2097 = vcombine.high %v2072, %v2088
        %v2098 = vcombine.low %v2079, %v2095
        %v2099 = vcombine.high %v2079, %v2095
        %2101 = vrot.lane.b32.xlu0 %v2097, 8
        %v2102 = vpop.permute.xlu0 %2101
        %2105 = vrot.lane.b32.xlu0 %v2098, 16
        %v2106 = vpop.permute.xlu0 %2105
        %2109 = vrot.lane.b32.xlu0 %v2099, 24
        %v2110 = vpop.permute.xlu0 %2109
        %v2112 = vsel %vm1059, %v2096, %v2102
        %vm2113 = vcmask 130048
        %v2114 = vsel %vm2113, %v2112, %v2106
        %vm2115 = vcmask 195584
        %v2116 = vsel %vm2115, %v2114, %v2110
        %v2117 = vld [vmem:[#allocation7] sm:$0xff]
        %v2118 = vld [vmem:[#allocation7 + $0x8] sm:$0xff]
        %v2119 = vld [vmem:[#allocation7 + $0x10] sm:$0xff]
        %v2120 = vld [vmem:[#allocation7 + $0x18] sm:$0xff]
        %v2121 = vld [vmem:[%s10] sm:$0x1]
        %v2123 = vlaneseq
        %v2124 = vshrl.u32 %v2123, 7
        %v2125 = vsub.s32 0, %v2124
        %v2126 = vrot.slane %v2121, %v2125
        %v2129 = vsel %vm658, %v2116, 0
        %2131 = vmatprep.subr.mxu0 0.0
        %2132 = vmatpush1.msra.mxu0 %v2117
        %2133 = vmatprep.subr.mxu0 0.0
        %2134 = vmatpush1.msra.mxu0 %v2118
        %2135 = vmatprep.subr.mxu0 0.0
        %2136 = vmatpush1.msra.mxu0 %v2119
        %2137 = vmatprep.subr.mxu0 0.0
        %2138 = vmatpush1.msra.mxu0 %v2120
        %2139 = vmatprep.subr.mxu0 0.0
        %2140 = vmatpush1.msra.mxu0 0.0
        %2141 = vmatprep.subr.mxu0 0.0
        %2142 = vmatpush1.msra.mxu0 0.0
        %2143 = vmatprep.subr.mxu0 0.0
        %2144 = vmatpush1.msra.mxu0 0.0
        %2145 = vmatprep.subr.mxu0 0.0
        %2146 = vmatpush1.msra.mxu0 0.0
        %2147 = vmatprep.subr.mxu0 0.0
        %2148 = vmatpush1.msra.mxu0 0.0
        %2149 = vmatprep.subr.mxu0 0.0
        %2150 = vmatpush1.msra.mxu0 0.0
        %2151 = vmatprep.subr.mxu0 0.0
        %2152 = vmatpush1.msra.mxu0 0.0
        %2153 = vmatprep.subr.mxu0 0.0
        %2154 = vmatpush1.msra.mxu0 0.0
        %2155 = vmatprep.subr.mxu0 0.0
        %2156 = vmatpush1.msra.mxu0 0.0
        %2157 = vmatprep.subr.mxu0 0.0
        %2158 = vmatpush1.msra.mxu0 0.0
        %2159 = vmatprep.subr.mxu0 0.0
        %2160 = vmatpush1.msra.mxu0 0.0
        %2161 = vmatprep.subr.mxu0 0.0
        %2162 = vmatpush1.msra.mxu0 0.0
        %2163 = vmatprep.subr.mxu0 0.0
        %2164 = vmatpush1.msra.mxu0 0.0
        %2165 = vmatprep.subr.mxu0 0.0
        %2166 = vmatpush1.msra.mxu0 0.0
        %2167 = vmatprep.subr.mxu0 0.0
        %2168 = vmatpush1.msra.mxu0 0.0
        %2169 = vmatprep.subr.mxu0 0.0
        %2170 = vmatpush1.msra.mxu0 0.0
        %2171 = vmatprep.subr.mxu0 0.0
        %2172 = vmatpush1.msra.mxu0 0.0
        %2173 = vmatprep.subr.mxu0 0.0
        %2174 = vmatpush1.msra.mxu0 0.0
        %2175 = vmatprep.subr.mxu0 0.0
        %2176 = vmatpush1.msra.mxu0 0.0
        %2177 = vmatprep.subr.mxu0 0.0
        %2178 = vmatpush1.msra.mxu0 0.0
        %2179 = vmatprep.subr.mxu0 0.0
        %2180 = vmatpush1.msra.mxu0 0.0
        %2181 = vmatprep.subr.mxu0 0.0
        %2182 = vmatpush1.msra.mxu0 0.0
        %2183 = vmatprep.subr.mxu0 0.0
        %2184 = vmatpush1.msra.mxu0 0.0
        %2185 = vmatprep.subr.mxu0 0.0
        %2186 = vmatpush1.msra.mxu0 0.0
        %2187 = vmatprep.subr.mxu0 0.0
        %2188 = vmatpush1.msra.mxu0 0.0
        %2189 = vmatprep.subr.mxu0 0.0
        %2190 = vmatpush1.msra.mxu0 0.0
        %2191 = vmatprep.subr.mxu0 0.0
        %2192 = vmatpush1.msra.mxu0 0.0
        %2193 = vmatprep.subr.mxu0 0.0
        %2194 = vmatpush1.msra.mxu0 0.0
        %2195 = vmatprep.mubr.f32.mxu0 0.0
        %2196 = vmatmul.mubr.f32.gmra.mrb[0].mxu0 %v2129
        %v2197 = vpop.f32.mrb[0].mxu0
        %v2198 = vadd.f32 %v2126, %v2197
        %v2199 = vpop.f32.mrb[0].mxu0
        %2200 = vdwg.mxu0
        %v2201 = vld [vmem:[#allocation8] sm:$0xff]
        %v2202 = vld [vmem:[#allocation8 + $0x8] sm:$0xff]
        %v2203 = vld [vmem:[#allocation8 + $0x10] sm:$0xff]
        %v2204 = vld [vmem:[#allocation8 + $0x18] sm:$0xff]
        %v2205 = vld [vmem:[%s12] sm:$0x1]
        %v2207 = vlaneseq
        %v2208 = vshrl.u32 %v2207, 7
        %v2209 = vsub.s32 0, %v2208
        %v2210 = vrot.slane %v2205, %v2209
        %v2213 = vsel %vm658, %v2198, 0
        %2215 = vmatprep.subr.mxu0 0.0
        %2216 = vmatpush1.msra.mxu0 %v2201
        %2217 = vmatprep.subr.mxu0 0.0
        %2218 = vmatpush1.msra.mxu0 %v2202
        %2219 = vmatprep.subr.mxu0 0.0
        %2220 = vmatpush1.msra.mxu0 %v2203
        %2221 = vmatprep.subr.mxu0 0.0
        %2222 = vmatpush1.msra.mxu0 %v2204
        %2223 = vmatprep.subr.mxu0 0.0
        %2224 = vmatpush1.msra.mxu0 0.0
        %2225 = vmatprep.subr.mxu0 0.0
        %2226 = vmatpush1.msra.mxu0 0.0
        %2227 = vmatprep.subr.mxu0 0.0
        %2228 = vmatpush1.msra.mxu0 0.0
        %2229 = vmatprep.subr.mxu0 0.0
        %2230 = vmatpush1.msra.mxu0 0.0
        %2231 = vmatprep.subr.mxu0 0.0
        %2232 = vmatpush1.msra.mxu0 0.0
        %2233 = vmatprep.subr.mxu0 0.0
        %2234 = vmatpush1.msra.mxu0 0.0
        %2235 = vmatprep.subr.mxu0 0.0
        %2236 = vmatpush1.msra.mxu0 0.0
        %2237 = vmatprep.subr.mxu0 0.0
        %2238 = vmatpush1.msra.mxu0 0.0
        %2239 = vmatprep.subr.mxu0 0.0
        %2240 = vmatpush1.msra.mxu0 0.0
        %2241 = vmatprep.subr.mxu0 0.0
        %2242 = vmatpush1.msra.mxu0 0.0
        %2243 = vmatprep.subr.mxu0 0.0
        %2244 = vmatpush1.msra.mxu0 0.0
        %2245 = vmatprep.subr.mxu0 0.0
        %2246 = vmatpush1.msra.mxu0 0.0
        %2247 = vmatprep.subr.mxu0 0.0
        %2248 = vmatpush1.msra.mxu0 0.0
        %2249 = vmatprep.subr.mxu0 0.0
        %2250 = vmatpush1.msra.mxu0 0.0
        %2251 = vmatprep.subr.mxu0 0.0
        %2252 = vmatpush1.msra.mxu0 0.0
        %2253 = vmatprep.subr.mxu0 0.0
        %2254 = vmatpush1.msra.mxu0 0.0
        %2255 = vmatprep.subr.mxu0 0.0
        %2256 = vmatpush1.msra.mxu0 0.0
        %2257 = vmatprep.subr.mxu0 0.0
        %2258 = vmatpush1.msra.mxu0 0.0
        %2259 = vmatprep.subr.mxu0 0.0
        %2260 = vmatpush1.msra.mxu0 0.0
        %2261 = vmatprep.subr.mxu0 0.0
        %2262 = vmatpush1.msra.mxu0 0.0
        %2263 = vmatprep.subr.mxu0 0.0
        %2264 = vmatpush1.msra.mxu0 0.0
        %2265 = vmatprep.subr.mxu0 0.0
        %2266 = vmatpush1.msra.mxu0 0.0
        %2267 = vmatprep.subr.mxu0 0.0
        %2268 = vmatpush1.msra.mxu0 0.0
        %2269 = vmatprep.subr.mxu0 0.0
        %2270 = vmatpush1.msra.mxu0 0.0
        %2271 = vmatprep.subr.mxu0 0.0
        %2272 = vmatpush1.msra.mxu0 0.0
        %2273 = vmatprep.subr.mxu0 0.0
        %2274 = vmatpush1.msra.mxu0 0.0
        %2275 = vmatprep.subr.mxu0 0.0
        %2276 = vmatpush1.msra.mxu0 0.0
        %2277 = vmatprep.subr.mxu0 0.0
        %2278 = vmatpush1.msra.mxu0 0.0
        %2279 = vmatprep.mubr.f32.mxu0 0.0
        %2280 = vmatmul.mubr.f32.gmra.mrb[0].mxu0 %v2213
        %v2281 = vpop.f32.mrb[0].mxu0
        %v2282 = vadd.f32 %v2210, %v2281
        %v2283 = vpop.f32.mrb[0].mxu0
        %2284 = vdwg.mxu0
        %v2285 = vmul.f32 %v2282, 0.5
        %v2286 = vmul.f32 %v2282, 0.044715
        %v2287 = vmul.f32 %v2286, %v2282
        %v2288 = vmul.f32 %v2287, %v2282
        %v2289 = vadd.f32 %v2282, %v2288
        %v2290 = vmul.f32 %v2289, 0.7978846
        %v2291 = vtanh.pop %v2290
        %v2292 = vadd.f32 %v2291, 1.0
        %v2293 = vmul.f32 %v2285, %v2292
        %v2294 = vld [vmem:[%s13] sm:$0xff]
        %v2295 = vld [vmem:[%s13 + $0x8] sm:$0xff]
        %v2296 = vld [vmem:[%s13 + $0x10] sm:$0xff]
        %v2297 = vld [vmem:[%s13 + $0x18] sm:$0xff]
        %v2298 = vld [vmem:[%s13 + $0x20] sm:$0xff]
        %v2299 = vld [vmem:[%s13 + $0x28] sm:$0xff]
        %v2300 = vld [vmem:[%s13 + $0x30] sm:$0xff]
        %v2301 = vld [vmem:[%s13 + $0x38] sm:$0xff]
        %v2302 = vld [vmem:[%s14] sm:$0x1]
        %v2304 = vlaneseq
        %v2305 = vshrl.u32 %v2304, 7
        %v2306 = vsub.s32 0, %v2305
        %v2307 = vrot.slane %v2302, %v2306
        %vm2309 = vcmask 523264
        %v2311 = vsel %vm2309, %v2293, 0
        %2313 = vmatprep.subr.mxu0 0.0
        %2314 = vmatpush1.msra.mxu0 %v2294
        %2315 = vmatprep.subr.mxu0 0.0
        %2316 = vmatpush1.msra.mxu0 %v2295
        %2317 = vmatprep.subr.mxu0 0.0
        %2318 = vmatpush1.msra.mxu0 %v2296
        %2319 = vmatprep.subr.mxu0 0.0
        %2320 = vmatpush1.msra.mxu0 %v2297
        %2321 = vmatprep.subr.mxu0 0.0
        %2322 = vmatpush1.msra.mxu0 %v2298
        %2323 = vmatprep.subr.mxu0 0.0
        %2324 = vmatpush1.msra.mxu0 %v2299
        %2325 = vmatprep.subr.mxu0 0.0
        %2326 = vmatpush1.msra.mxu0 %v2300
        %2327 = vmatprep.subr.mxu0 0.0
        %2328 = vmatpush1.msra.mxu0 %v2301
        %2329 = vmatprep.subr.mxu0 0.0
        %2330 = vmatpush1.msra.mxu0 0.0
        %2331 = vmatprep.subr.mxu0 0.0
        %2332 = vmatpush1.msra.mxu0 0.0
        %2333 = vmatprep.subr.mxu0 0.0
        %2334 = vmatpush1.msra.mxu0 0.0
        %2335 = vmatprep.subr.mxu0 0.0
        %2336 = vmatpush1.msra.mxu0 0.0
        %2337 = vmatprep.subr.mxu0 0.0
        %2338 = vmatpush1.msra.mxu0 0.0
        %2339 = vmatprep.subr.mxu0 0.0
        %2340 = vmatpush1.msra.mxu0 0.0
        %2341 = vmatprep.subr.mxu0 0.0
        %2342 = vmatpush1.msra.mxu0 0.0
        %2343 = vmatprep.subr.mxu0 0.0
        %2344 = vmatpush1.msra.mxu0 0.0
        %2345 = vmatprep.subr.mxu0 0.0
        %2346 = vmatpush1.msra.mxu0 0.0
        %2347 = vmatprep.subr.mxu0 0.0
        %2348 = vmatpush1.msra.mxu0 0.0
        %2349 = vmatprep.subr.mxu0 0.0
        %2350 = vmatpush1.msra.mxu0 0.0
        %2351 = vmatprep.subr.mxu0 0.0
        %2352 = vmatpush1.msra.mxu0 0.0
        %2353 = vmatprep.subr.mxu0 0.0
        %2354 = vmatpush1.msra.mxu0 0.0
        %2355 = vmatprep.subr.mxu0 0.0
        %2356 = vmatpush1.msra.mxu0 0.0
        %2357 = vmatprep.subr.mxu0 0.0
        %2358 = vmatpush1.msra.mxu0 0.0
        %2359 = vmatprep.subr.mxu0 0.0
        %2360 = vmatpush1.msra.mxu0 0.0
        %2361 = vmatprep.subr.mxu0 0.0
        %2362 = vmatpush1.msra.mxu0 0.0
        %2363 = vmatprep.subr.mxu0 0.0
        %2364 = vmatpush1.msra.mxu0 0.0
        %2365 = vmatprep.subr.mxu0 0.0
        %2366 = vmatpush1.msra.mxu0 0.0
        %2367 = vmatprep.subr.mxu0 0.0
        %2368 = vmatpush1.msra.mxu0 0.0
        %2369 = vmatprep.subr.mxu0 0.0
        %2370 = vmatpush1.msra.mxu0 0.0
        %2371 = vmatprep.subr.mxu0 0.0
        %2372 = vmatpush1.msra.mxu0 0.0
        %2373 = vmatprep.subr.mxu0 0.0
        %2374 = vmatpush1.msra.mxu0 0.0
        %2375 = vmatprep.subr.mxu0 0.0
        %2376 = vmatpush1.msra.mxu0 0.0
        %2377 = vmatprep.mubr.f32.mxu0 0.0
        %2378 = vmatmul.mubr.f32.gmra.mrb[0].mxu0 %v2311
        %v2379 = vpop.f32.mrb[0].mxu0
        %v2380 = vadd.f32 %v2307, %v2379
        %v2381 = vpop.f32.mrb[0].mxu0
        %2382 = vdwg.mxu0
        %v2383 = vadd.f32 %v2380, %v2198
        %v2384 = vsel %vm658, %v2383, 0.0
        %2385 = vadd.xlane.f32.xlu0 %v2384
        %v2386 = vpop.xlane.xlu0 %2385
        %v2387 = vrcp.pop 32.0
        %v2388 = vmul.f32 %v2386, %v2387
        %v2389 = vsub.f32 %v2383, %v2388
        %v2390 = vmul.f32 %v2389, %v2389
        %v2391 = vsel %vm658, %v2390, 0.0
        %2392 = vadd.xlane.f32.xlu0 %v2391
        %v2393 = vpop.xlane.xlu0 %2392
        %v2394 = vmul.f32 %v2393, %v2387
        %v2395 = vadd.f32 %v2394, 1e-12
        %v2396 = vrsqrt.pop %v2395
        %v2397 = vmul.f32 %v2389, %v2396
        %v2398 = vld [vmem:[%s15] sm:$0x1]
        %v2400 = vlaneseq
        %v2401 = vshrl.u32 %v2400, 7
        %v2402 = vsub.s32 0, %v2401
        %v2403 = vrot.slane %v2398, %v2402
        %v2405 = vmul.f32 %v2397, %v2403
        %v2406 = vld [vmem:[%s16] sm:$0x1]
        %v2408 = vlaneseq
        %v2409 = vshrl.u32 %v2408, 7
        %v2410 = vsub.s32 0, %v2409
        %v2411 = vrot.slane %v2406, %v2410
        %v2413 = vadd.f32 %v2405, %v2411
        %2414 = vst.msk [vmem:[%s640] sm:$0xff] %vm658, %v2413
        %s2415 = sand.u32 %s418, 1
        %s2416 = scalar_lea.sflag [#allocation4], %s2415
        %s2417 = sand.u32 %s418, 1
        %s2418 = smul.addr %s2417, 8
        %s2419 = scalar_lea.vmem [#allocation10], %s2418
        // Predicated region
        $region105: #{tpu_custom_call.1} parent=87 // pred_check
          %p2420 = pneg %p428
        $region106: #{tpu_custom_call.1} parent=87 // pred_check_branch
          %2422 = sbr.rel (%p2420) target = $region108
        $region107: #{tpu_custom_call.1} parent=87 // pred_region
          %s2424 = ssub.s32 128, 128
          %2425 = vsyncadd %s2416, %s2424
          %s2426 = smul.addr %s38, 128
          %s2427 = scalar_lea.hbm %s17, %s2426
          %s2429 = sshll.u32 %s2419, 4
          %s2430 = int_to_ptr.vmem [resolvable:$true] %s2429
          %2432 = dma.vmem_to_hbm [thread:$0]  %s2430, 128, %s2427, %s2416
        $region108: #{tpu_custom_call.1} parent=87 // pred_fallthru
          _
      $region88: #{tpu_custom_call.1} parent=5 // pred_fallthru
        _
      %p2433 = scmp.le.s32.totalorder 2, %s33
      // Predicated region
      $region109: #{tpu_custom_call.1} parent=5 // pred_check
        %p2434 = pneg %p2433
      $region110: #{tpu_custom_call.1} parent=5 // pred_check_branch
        %2436 = sbr.rel (%p2434) target = $region112
      $region111: #{tpu_custom_call.1} parent=5 // pred_region
        %s2437 = ssub.s32 %s33, 2
        // Predicated region
        $region113: #{tpu_custom_call.1} parent=111 // pred_check
          %p2438 = pneg %p434
        $region114: #{tpu_custom_call.1} parent=111 // pred_check_branch
          %2440 = sbr.rel (%p2438) target = $region116
        $region115: #{tpu_custom_call.1} parent=111 // pred_region
          %s2441 = sand.u32 %s419, 1
          %s2442 = scalar_lea.sflag [#allocation4], %s2441
          %s2443 = sand.u32 %s419, 1
          %s2444 = smul.addr %s2443, 8
          %s2445 = scalar_lea.vmem [#allocation10], %s2444
          %2446 = dma.done %s2442, 128
        $region116: #{tpu_custom_call.1} parent=111 // pred_fallthru
          _
      $region112: #{tpu_custom_call.1} parent=5 // pred_fallthru
        _
    $region6: #{tpu_custom_call.1} parent=1 // loop_footer
      %s37 = sadd.s32 1, %s33
    $region7: #{tpu_custom_call.1} parent=1 // loop_footer_branch
      %32 = sbr.rel target = $region3
    $region8: #{tpu_custom_call.1} parent=1 // loop_exit
      _
    %2447 = vsyncpa [#allocation3], 1
    %s2448 = scalar_lea.sflag [#allocation3], 1
    %2449 = vsyncpa %s2448, 1
    %2450 = vsyncpa [#allocation6], 1
    %s2451 = scalar_lea.sflag [#allocation6], 1
    %2452 = vsyncpa %s2451, 1
    %2453 = vsyncpa [#allocation9], 1
    %2454 = vsyncpa [#allocation4], 1
    %s2455 = scalar_lea.sflag [#allocation4], 1
    %2456 = vsyncpa %s2455, 1

</llo_original>
